<compile_context>
chip_gen: v6e
topology: v6e:2x2x1
jax: 0.10.0
libtpu: 0.0.40
codegen_flags: <defaults>
</compile_context>

<pallas_src>
import functools

import jax
import jax.numpy as jnp
from jax.experimental import pallas as pl
from jax.experimental.pallas import tpu as pltpu

EMBED_DIM = 128
INPUT_DIM = 52706
POOL_RATIO = 0.8
TM = 512  # node-row tile for the fused SAGE kernel (sweep 256-1024)


def _full_spec(shape):
    # whole-array block (used only for the tiny MLP head)
    return pl.BlockSpec(shape, lambda *_: (0,) * len(shape))


# --------------------------------------------------------------------------- #
# Pallas kernel 1: fused CSR mean-aggregation + SAGEConv + ReLU + TopK score
#   agg_i = mean_{(j->i) in E} x_j                    (in-VMEM gather/scatter)
#   y     = relu([agg | x] @ [W_l ; W_r] + b)         (K=256 bf16 MXU, f32 acc)
#   score = tanh(sum(y * w_hat, axis=-1))             (VPU mul + XLU reduce)
# --------------------------------------------------------------------------- #
def _sage_fused_kernel(rowptr_ref, src_ref, ldst_ref,            # SMEM prefetch
                       xfull_ref, invdeg_ref, w_ref, b_ref, watt_ref,
                       y_ref, s_ref,                              # outputs
                       acc_ref):                                  # VMEM scratch
    i = pl.program_id(0)
    tm = acc_ref.shape[0]

    # ---- CSR scatter-sum of source rows for this destination row tile ----
    acc_ref[...] = jnp.zeros_like(acc_ref)
    e_lo = rowptr_ref[i]
    e_hi = rowptr_ref[i + 1]

    def edge_body(e, carry):
        s = src_ref[e]                  # global source node row
        d = ldst_ref[e]                 # destination row within this tile
        row = xfull_ref[pl.ds(s, 1), :]                       # (1, F) f32
        acc_ref[pl.ds(d, 1), :] = acc_ref[pl.ds(d, 1), :] + row
        return carry

    jax.lax.fori_loop(e_lo, e_hi, edge_body, 0)

    # ---- mean + fused SAGEConv matmul (single K=256 bf16 contraction) ----
    agg = (acc_ref[...] * invdeg_ref[...]).astype(jnp.bfloat16)
    base = pl.multiple_of(i * tm, tm)
    x_self = xfull_ref[pl.ds(base, tm), :].astype(jnp.bfloat16)
    xcat = jnp.concatenate([agg, x_self], axis=-1)            # (tm, 2F) bf16
    y = jnp.dot(xcat, w_ref[...], preferred_element_type=jnp.float32)
    y = jnp.maximum(y + b_ref[...], 0.0)
    y_ref[...] = y.astype(y_ref.dtype)                        # bf16 writeback
    # TopKPooling score: tanh((y . w)/||w||)
    s_ref[...] = jnp.tanh(jnp.sum(y * watt_ref[...], axis=-1, keepdims=True))


def sage_conv_fused(rowptr, src_s, ldst_s, xfull, invdeg, w_cat, b, w_hat, *, tm):
    """rowptr:[T+1] i32, src_s/ldst_s:[E] i32 (CSR by dst tile), xfull:[Np,F] f32,
    invdeg:[Np,1] f32, w_cat:[2F,F] bf16, b/w_hat:[1,F] f32
    -> (y:[Np,F] bf16, score:[Np,1] f32)."""
    n_pad, f = xfull.shape
    grid = (n_pad // tm,)
    return pl.pallas_call(
        _sage_fused_kernel,
        out_shape=(jax.ShapeDtypeStruct((n_pad, f), jnp.bfloat16),
                   jax.ShapeDtypeStruct((n_pad, 1), jnp.float32)),
        grid_spec=pltpu.PrefetchScalarGridSpec(
            num_scalar_prefetch=3,
            grid=grid,
            in_specs=[
                # full feature matrix, VMEM-resident across the row-tile grid.
                # TODO(synk): for very large N this should become
                # memory_space=pl.ANY + manual per-row DMA gather from HBM.
                pl.BlockSpec((n_pad, f), lambda i, *_: (0, 0)),
                pl.BlockSpec((tm, 1), lambda i, *_: (i, 0)),     # 1/deg
                pl.BlockSpec((2 * f, f), lambda i, *_: (0, 0)),  # [W_l;W_r]
                pl.BlockSpec((1, f), lambda i, *_: (0, 0)),      # bias
                pl.BlockSpec((1, f), lambda i, *_: (0, 0)),      # normalized w
            ],
            out_specs=(pl.BlockSpec((tm, f), lambda i, *_: (i, 0)),
                       pl.BlockSpec((tm, 1), lambda i, *_: (i, 0))),
            scratch_shapes=[pltpu.VMEM((tm, f), jnp.float32)],
        ),
        compiler_params=pltpu.CompilerParams(
            dimension_semantics=("parallel",),
            vmem_limit_bytes=32 * 1024 * 1024),
    )(rowptr, src_s, ldst_s, xfull, invdeg, w_cat, b, w_hat)


# --------------------------------------------------------------------------- #
# Pallas kernel 2: fused MLP head (lane-dense padded output)
#   sigmoid(relu(relu(x @ W1 + b1) @ W2 + b2) @ W3p + b3p)
# --------------------------------------------------------------------------- #
def _head_kernel(x_ref, w1_ref, b1_ref, w2_ref, b2_ref, w3_ref, b3_ref, o_ref):
    h = jnp.dot(x_ref[...], w1_ref[...], preferred_element_type=jnp.float32) + b1_ref[...]
    h = jnp.maximum(h, 0.0)
    h = jnp.dot(h, w2_ref[...], preferred_element_type=jnp.float32) + b2_ref[...]
    h = jnp.maximum(h, 0.0)
    # TODO(synk): dropout(p=0.5) reproduced in eval mode (identity); training-mode
    # dropout would need pltpu.prng_* and cannot match torch's RNG stream anyway.
    y = jnp.dot(h, w3_ref[...], preferred_element_type=jnp.float32) + b3_ref[...]
    o_ref[...] = jax.nn.sigmoid(y)


def mlp_head(xg, w1, b1, w2, b2, w3p, b3p):
    B, F = xg.shape
    b_pad = max(8, ((B + 7) // 8) * 8)
    x = jnp.zeros((b_pad, F), jnp.float32).at[:B].set(xg)
    args = (x, w1, b1, w2, b2, w3p, b3p)
    out = pl.pallas_call(
        _head_kernel,
        out_shape=jax.ShapeDtypeStruct((b_pad, 128), jnp.float32),
        in_specs=[_full_spec(a.shape) for a in args],
        out_specs=_full_spec((b_pad, 128)),
    )(*args)
    return out[:B, 0]


# --------------------------------------------------------------------------- #
# On-device graph glue (static shapes, no host round-trips)
# --------------------------------------------------------------------------- #
def topk_keep(score, node_mask, batch, ratio, num_graphs):
    """Per-graph TopK (ratio) keep mask, sort-based O(N log N).

    Ordering: batch asc, score desc, index asc (matches a stable descending
    sort; torch.topk's tie order is unspecified).
    """
    n = score.shape[0]
    valid = node_mask > 0.5
    b_key = jnp.where(valid, batch, num_graphs).astype(jnp.int32)   # invalid last
    neg_s = jnp.where(valid, -score, jnp.inf).astype(jnp.float32)
    idx = jnp.arange(n, dtype=jnp.int32)
    sb, _, order = jax.lax.sort((b_key, neg_s, idx), num_keys=3)
    counts = jax.ops.segment_sum(valid.astype(jnp.int32), batch,
                                 num_segments=num_graphs)
    starts = jnp.concatenate(
        [jnp.zeros((1,), jnp.int32), jnp.cumsum(counts, dtype=jnp.int32)[:-1]])
    k = jnp.ceil(ratio * counts.astype(jnp.float32)).astype(jnp.int32)
    gc = jnp.minimum(sb, num_graphs - 1)
    rank = jnp.arange(n, dtype=jnp.int32) - starts[gc]
    keep_sorted = (sb < num_graphs) & (rank < k[gc])
    return jnp.zeros((n,), jnp.bool_).at[order].set(keep_sorted)


def masked_gap(x, keep_f, batch, num_graphs):
    """global mean pool over kept nodes (x already zeroed for dropped nodes)."""
    sums = jax.ops.segment_sum(x, batch, num_segments=num_graphs)
    cnt = jax.ops.segment_sum(keep_f, batch, num_segments=num_graphs)
    return sums / jnp.maximum(cnt, 1.0)[:, None]


def sage_pool_layer(x, node_mask, batch, edge_index, edge_mask,
                    w_cat, b, w_hat, num_graphs, tm):
    n_pad = x.shape[0]
    num_tiles = n_pad // tm
    src = edge_index[0].astype(jnp.int32)
    dst = edge_index[1].astype(jnp.int32)
    valid_e = edge_mask > 0.5

    # ---- CSR-by-destination-tile edge layout (O(E log E), on device) ----
    key = jnp.where(valid_e, dst, n_pad).astype(jnp.int32)      # invalid last
    ldst = (dst % tm).astype(jnp.int32)
    _, src_s, ldst_s = jax.lax.sort((key, src, ldst), num_keys=1)
    tile_id = dst // tm
    counts_tile = jax.ops.segment_sum(valid_e.astype(jnp.int32), tile_id,
                                      num_segments=num_tiles)
    rowptr = jnp.concatenate(
        [jnp.zeros((1,), jnp.int32), jnp.cumsum(counts_tile, dtype=jnp.int32)])
    deg = jax.ops.segment_sum(edge_mask, dst, num_segments=n_pad)
    invdeg = (1.0 / jnp.maximum(deg, 1.0)).reshape(n_pad, 1)

    # ---- fused aggregation + SAGEConv + ReLU + pooling score ----
    y, score = sage_conv_fused(rowptr, src_s, ldst_s, x, invdeg,
                               w_cat, b, w_hat, tm=tm)
    score = score[:, 0]

    # ---- TopKPooling without compaction: keep mask + tanh-score gating ----
    keep = topk_keep(score, node_mask, batch, POOL_RATIO, num_graphs)
    keep_f = keep.astype(jnp.float32)
    gate = score * keep_f
    x_new = y.astype(jnp.float32) * gate[:, None]
    edge_mask_new = edge_mask * keep_f[src] * keep_f[dst]
    readout = masked_gap(x_new, keep_f, batch, num_graphs)
    return x_new, keep_f, edge_mask_new, readout


# --------------------------------------------------------------------------- #
# Parameters + forward
# --------------------------------------------------------------------------- #
def init_params(key):
    ks = jax.random.split(key, 16)

    def dense(k, fan_in, shape):
        s = 1.0 / jnp.sqrt(float(fan_in))
        return jax.random.uniform(k, shape, jnp.float32, -s, s)

    p = {"embedding": 0.05 * jax.random.normal(
        ks[0], (INPUT_DIM + 10, EMBED_DIM), jnp.float32)}
    for i, layer in enumerate((1, 2, 3)):
        p[f"conv{layer}_wl"] = dense(ks[1 + 4 * i], EMBED_DIM, (EMBED_DIM, 128))
        p[f"conv{layer}_wr"] = dense(ks[2 + 4 * i], EMBED_DIM, (EMBED_DIM, 128))
        p[f"conv{layer}_b"] = jnp.zeros((128,), jnp.float32)
        p[f"pool{layer}_w"] = dense(ks[3 + 4 * i], 128, (128,))
    p["lin1_w"] = dense(ks[13], 128, (128, 128))
    p["lin1_b"] = jnp.zeros((128,), jnp.float32)
    p["lin2_w"] = dense(ks[14], 128, (128, 64))
    p["lin2_b"] = jnp.zeros((64,), jnp.float32)
    p["lin3_w"] = dense(ks[15], 64, (64, 1))
    p["lin3_b"] = jnp.zeros((1,), jnp.float32)
    return p


def prepare_params(p):
    """One-time parameter prep hoisted out of the forward pass."""
    q = {"embedding": p["embedding"]}
    for layer in (1, 2, 3):
        q[f"conv{layer}_w"] = jnp.concatenate(
            [p[f"conv{layer}_wl"], p[f"conv{layer}_wr"]], axis=0
        ).astype(jnp.bfloat16)                                     # [256,128] bf16
        q[f"conv{layer}_b"] = p[f"conv{layer}_b"].reshape(1, -1)
        w = p[f"pool{layer}_w"]
        q[f"pool{layer}_w"] = (w / jnp.linalg.norm(w)).reshape(1, -1)
    q["lin1_w"] = p["lin1_w"]
    q["lin1_b"] = p["lin1_b"].reshape(1, -1)
    q["lin2_w"] = p["lin2_w"]
    q["lin2_b"] = p["lin2_b"].reshape(1, -1)
    # lane-dense padded lin3: [64,128]/[1,128]; column 0 holds the real head
    q["lin3_w"] = jnp.zeros((64, 128), jnp.float32).at[:, 0].set(p["lin3_w"][:, 0])
    q["lin3_b"] = jnp.zeros((1, 128), jnp.float32).at[0, 0].set(p["lin3_b"][0])
    return q


@functools.partial(jax.jit, static_argnames=("num_graphs",))
def net_forward(params, x_ids, edge_index, node_mask, batch, num_graphs):
    # embedding lookup + squeeze(1); zero padded rows
    x = jnp.take(params["embedding"], x_ids[:, 0], axis=0) * node_mask[:, None]
    edge_mask = jnp.ones((edge_index.shape[1],), jnp.float32)

    readouts = []
    for layer in (1, 2, 3):
        x, node_mask, edge_mask, r = sage_pool_layer(
            x, node_mask, batch, edge_index, edge_mask,
            params[f"conv{layer}_w"], params[f"conv{layer}_b"],
            params[f"pool{layer}_w"], num_graphs, TM)
        readouts.append(r)

    xg = readouts[0] + readouts[1] + readouts[2]
    return mlp_head(xg,
                    params["lin1_w"], params["lin1_b"],
                    params["lin2_w"], params["lin2_b"],
                    params["lin3_w"], params["lin3_b"])   # [num_graphs]


# --------------------------------------------------------------------------- #
if __name__ == "__main__":
    key = jax.random.PRNGKey(0)
    k_par, k_ids, k_src, k_dst = jax.random.split(key, 4)

    params = prepare_params(init_params(k_par))

    num_graphs = 2
    nodes_per_graph = 16
    edges_per_graph = 40
    N = num_graphs * nodes_per_graph
    # pad node axis to a multiple of TM with >= 2 tiles (v7x megacore sharding)
    num_tiles = max(2, -(-N // TM))
    N_pad = num_tiles * TM
    assert N_pad % TM == 0

    # node item ids, shape [N, 1] (as in data.x for the embedding layer)
    x_ids = jax.random.randint(k_ids, (N, 1), 0, INPUT_DIM, dtype=jnp.int32)
    x_ids_pad = jnp.zeros((N_pad, 1), jnp.int32).at[:N].set(x_ids)

    # random intra-graph edges
    src = jax.random.randint(k_src, (num_graphs, edges_per_graph), 0,
                             nodes_per_graph, dtype=jnp.int32)
    dst = jax.random.randint(k_dst, (num_graphs, edges_per_graph), 0,
                             nodes_per_graph, dtype=jnp.int32)
    offs = jnp.arange(num_graphs, dtype=jnp.int32)[:, None] * nodes_per_graph
    edge_index = jnp.stack([(src + offs).reshape(-1), (dst + offs).reshape(-1)])

    batch = jnp.repeat(jnp.arange(num_graphs, dtype=jnp.int32), nodes_per_graph)
    batch_pad = jnp.zeros((N_pad,), jnp.int32).at[:N].set(batch)
    node_mask = jnp.zeros((N_pad,), jnp.float32).at[:N].set(1.0)

    out = net_forward(params, x_ids_pad, edge_index, node_mask, batch_pad,
                      num_graphs=num_graphs)
    out = jax.block_until_ready(out)
    assert out.shape == (num_graphs,)
    assert bool(jnp.all(jnp.isfinite(out)))
    print("KERNEL_OK")
</pallas_src>

<mosaic_0001>
module attributes {stable_mosaic.version = 11 : i64} {
  func.func private @main(%arg0: i32) attributes {dimension_semantics = [#tpu.dimension_semantics<core_parallel>], iteration_bounds = array<i64: 2>, tpu.core_type = #tpu.core_type<sc_scalar_subcore>, window_params = []} {
    return
  }
}

module attributes {stable_mosaic.version = 11 : i64} {
  func.func private @main(%arg0: i32) attributes {dimension_semantics = [#tpu.dimension_semantics<core_parallel>], iteration_bounds = array<i64: 2>, tpu.core_type = #tpu.core_type<sc_scalar_subcore>, window_params = []} {
    return
  }
}

module attributes {stable_mosaic.version = 11 : i64} {
  func.func @_sage_fused_kernel(%arg0: i32, %arg1: memref<3xi32, #tpu.memory_space<smem>>, %arg2: memref<80xi32, #tpu.memory_space<smem>>, %arg3: memref<80xi32, #tpu.memory_space<smem>>, %arg4: memref<1024x128xf32, #tpu.memory_space<vmem>>, %arg5: memref<512x1xf32, #tpu.memory_space<vmem>>, %arg6: memref<256x128xbf16, #tpu.memory_space<vmem>>, %arg7: memref<1x128xf32, #tpu.memory_space<vmem>>, %arg8: memref<1x128xf32, #tpu.memory_space<vmem>>, %arg9: memref<512x128xbf16, #tpu.memory_space<vmem>>, %arg10: memref<512x1xf32, #tpu.memory_space<vmem>>, %arg11: memref<512x128xf32, #tpu.memory_space<vmem>>) attributes {dimension_semantics = [#tpu.dimension_semantics<parallel>], iteration_bounds = array<i64: 2>, scalar_prefetch = 3 : i64, scratch_operands = 1 : i64, tpu.core_type = #tpu.core_type<tc>, window_params = [{pipeline_mode = #tpu.pipeline_mode<synchronous>, transform_indices = @transform_0, window_bounds = array<i64: 1024, 128>}, {transform_indices = @transform_1, window_bounds = array<i64: 512, 1>}, {pipeline_mode = #tpu.pipeline_mode<synchronous>, transform_indices = @transform_2, window_bounds = array<i64: 256, 128>}, {pipeline_mode = #tpu.pipeline_mode<synchronous>, transform_indices = @transform_3, window_bounds = array<i64: 1, 128>}, {pipeline_mode = #tpu.pipeline_mode<synchronous>, transform_indices = @transform_4, window_bounds = array<i64: 1, 128>}, {transform_indices = @transform_5, window_bounds = array<i64: 512, 128>}, {transform_indices = @transform_6, window_bounds = array<i64: 512, 1>}]} {
    %cst = arith.constant 0.000000e+00 : f32
    %0 = vector.broadcast %cst : f32 to vector<512x128xf32>
    %c0 = arith.constant 0 : index
    %c0_0 = arith.constant 0 : index
    %1 = vector.load %arg11[%c0, %c0_0] : memref<512x128xf32, #tpu.memory_space<vmem>>, vector<512x128xf32>
    tpu.vector_store %arg11[%c0, %c0_0], %0 {strides = array<i32>} : memref<512x128xf32, #tpu.memory_space<vmem>>, vector<512x128xf32>,
    %2 = arith.index_cast %arg0 : i32 to index
    %3 = memref.load %arg1[%2] : memref<3xi32, #tpu.memory_space<smem>>
    %c1_i32 = arith.constant 1 : i32
    %4 = arith.addi %arg0, %c1_i32 : i32
    %5 = arith.index_cast %4 : i32 to index
    %6 = memref.load %arg1[%5] : memref<3xi32, #tpu.memory_space<smem>>
    %c0_i32 = arith.constant 0 : i32
    %7 = arith.subi %6, %3 : i32
    %8 = arith.addi %3, %7 : i32
    %c1_i32_1 = arith.constant 1 : i32
    scf.for %arg12 = %3 to %8 step %c1_i32_1  : i32 {
      %36 = arith.index_cast %arg12 : i32 to index
      %37 = memref.load %arg2[%36] : memref<80xi32, #tpu.memory_space<smem>>
      %38 = arith.index_cast %arg12 : i32 to index
      %39 = memref.load %arg3[%38] : memref<80xi32, #tpu.memory_space<smem>>
      %40 = arith.index_cast %37 : i32 to index
      %c0_20 = arith.constant 0 : index
      %41 = vector.load %arg4[%40, %c0_20] : memref<1024x128xf32, #tpu.memory_space<vmem>>, vector<1x128xf32>
      %42 = arith.index_cast %39 : i32 to index
      %c0_21 = arith.constant 0 : index
      %43 = vector.load %arg11[%42, %c0_21] : memref<512x128xf32, #tpu.memory_space<vmem>>, vector<1x128xf32>
      %44 = arith.addf %43, %41 : vector<1x128xf32>
      %45 = arith.index_cast %39 : i32 to index
      %c0_22 = arith.constant 0 : index
      %46 = vector.load %arg11[%45, %c0_22] : memref<512x128xf32, #tpu.memory_space<vmem>>, vector<1x128xf32>
      tpu.vector_store %arg11[%45, %c0_22], %44 {strides = array<i32>} : memref<512x128xf32, #tpu.memory_space<vmem>>, vector<1x128xf32>,
    }
    %c0_2 = arith.constant 0 : index
    %c0_3 = arith.constant 0 : index
    %9 = vector.load %arg11[%c0_2, %c0_3] : memref<512x128xf32, #tpu.memory_space<vmem>>, vector<512x128xf32>
    %c0_4 = arith.constant 0 : index
    %c0_5 = arith.constant 0 : index
    %10 = vector.load %arg5[%c0_4, %c0_5] : memref<512x1xf32, #tpu.memory_space<vmem>>, vector<512x1xf32>
    %11 = vector.broadcast %10 : vector<512x1xf32> to vector<512x128xf32>
    %12 = arith.mulf %9, %11 : vector<512x128xf32>
    %13 = arith.truncf %12 : vector<512x128xf32> to vector<512x128xbf16>
    %c512_i32 = arith.constant 512 : i32
    %14 = arith.muli %arg0, %c512_i32 : i32
    %15 = tpu.assume_multiple %14, 512 : i32
    %16 = arith.index_cast %15 : i32 to index
    %c0_6 = arith.constant 0 : index
    %17 = vector.load %arg4[%16, %c0_6] : memref<1024x128xf32, #tpu.memory_space<vmem>>, vector<512x128xf32>
    %18 = arith.truncf %17 : vector<512x128xf32> to vector<512x128xbf16>
    %19 = tpu.concatenate %13, %18 in 1 : vector<512x128xbf16>, vector<512x128xbf16> -> vector<512x256xbf16>
    %c0_7 = arith.constant 0 : index
    %c0_8 = arith.constant 0 : index
    %20 = vector.load %arg6[%c0_7, %c0_8] : memref<256x128xbf16, #tpu.memory_space<vmem>>, vector<256x128xbf16>
    %cst_9 = arith.constant dense<0.000000e+00> : vector<512x128xf32>
    %21 = tpu.matmul %19, %20, %cst_9 {dimension_numbers = #tpu.dot_dimension_numbers<[1], [0], [0], [1], [0, 0, 1, 1], [], []>} : vector<512x256xbf16>, vector<256x128xbf16>, vector<512x128xf32> -> vector<512x128xf32>
    %c0_10 = arith.constant 0 : index
    %c0_11 = arith.constant 0 : index
    %22 = vector.load %arg7[%c0_10, %c0_11] : memref<1x128xf32, #tpu.memory_space<vmem>>, vector<1x128xf32>
    %23 = vector.broadcast %22 : vector<1x128xf32> to vector<512x128xf32>
    %24 = arith.addf %21, %23 : vector<512x128xf32>
    %cst_12 = arith.constant 0.000000e+00 : f32
    %25 = vector.broadcast %cst_12 : f32 to vector<512x128xf32>
    %26 = arith.maximumf %24, %25 : vector<512x128xf32>
    %27 = arith.truncf %26 : vector<512x128xf32> to vector<512x128xbf16>
    %c0_13 = arith.constant 0 : index
    %c0_14 = arith.constant 0 : index
    %28 = vector.load %arg9[%c0_13, %c0_14] : memref<512x128xbf16, #tpu.memory_space<vmem>>, vector<512x128xbf16>
    tpu.vector_store %arg9[%c0_13, %c0_14], %27 {strides = array<i32>} : memref<512x128xbf16, #tpu.memory_space<vmem>>, vector<512x128xbf16>,
    %c0_15 = arith.constant 0 : index
    %c0_16 = arith.constant 0 : index
    %29 = vector.load %arg8[%c0_15, %c0_16] : memref<1x128xf32, #tpu.memory_space<vmem>>, vector<1x128xf32>
    %30 = vector.broadcast %29 : vector<1x128xf32> to vector<512x128xf32>
    %31 = arith.mulf %26, %30 : vector<512x128xf32>
    %cst_17 = arith.constant dense<0.000000e+00> : vector<512xf32>
    %32 = vector.multi_reduction <add>, %31, %cst_17 [1] : vector<512x128xf32> to vector<512xf32>
    %33 = vector.shape_cast %32 : vector<512xf32> to vector<512x1xf32>
    %34 = math.tanh %33 : vector<512x1xf32>
    %c0_18 = arith.constant 0 : index
    %c0_19 = arith.constant 0 : index
    %35 = vector.load %arg10[%c0_18, %c0_19] : memref<512x1xf32, #tpu.memory_space<vmem>>, vector<512x1xf32>
    tpu.vector_store %arg10[%c0_18, %c0_19], %34 {strides = array<i32>} : memref<512x1xf32, #tpu.memory_space<vmem>>, vector<512x1xf32>,
    return
  }
  func.func @transform_0(%arg0: i32, %arg1: memref<3xi32, #tpu.memory_space<smem>>, %arg2: memref<80xi32, #tpu.memory_space<smem>>, %arg3: memref<80xi32, #tpu.memory_space<smem>>) -> (i32, i32) {
    %c0_i32 = arith.constant 0 : i32
    %c0_i32_0 = arith.constant 0 : i32
    %c0_i32_1 = arith.constant 0 : i32
    return %c0_i32, %c0_i32_0 : i32, i32
  }
  func.func @transform_1(%arg0: i32, %arg1: memref<3xi32, #tpu.memory_space<smem>>, %arg2: memref<80xi32, #tpu.memory_space<smem>>, %arg3: memref<80xi32, #tpu.memory_space<smem>>) -> (i32, i32) {
    %c0_i32 = arith.constant 0 : i32
    %c0_i32_0 = arith.constant 0 : i32
    return %arg0, %c0_i32 : i32, i32
  }
  func.func @transform_2(%arg0: i32, %arg1: memref<3xi32, #tpu.memory_space<smem>>, %arg2: memref<80xi32, #tpu.memory_space<smem>>, %arg3: memref<80xi32, #tpu.memory_space<smem>>) -> (i32, i32) {
    %c0_i32 = arith.constant 0 : i32
    %c0_i32_0 = arith.constant 0 : i32
    %c0_i32_1 = arith.constant 0 : i32
    return %c0_i32, %c0_i32_0 : i32, i32
  }
  func.func @transform_3(%arg0: i32, %arg1: memref<3xi32, #tpu.memory_space<smem>>, %arg2: memref<80xi32, #tpu.memory_space<smem>>, %arg3: memref<80xi32, #tpu.memory_space<smem>>) -> (i32, i32) {
    %c0_i32 = arith.constant 0 : i32
    %c0_i32_0 = arith.constant 0 : i32
    %c0_i32_1 = arith.constant 0 : i32
    return %c0_i32, %c0_i32_0 : i32, i32
  }
  func.func @transform_4(%arg0: i32, %arg1: memref<3xi32, #tpu.memory_space<smem>>, %arg2: memref<80xi32, #tpu.memory_space<smem>>, %arg3: memref<80xi32, #tpu.memory_space<smem>>) -> (i32, i32) {
    %c0_i32 = arith.constant 0 : i32
    %c0_i32_0 = arith.constant 0 : i32
    %c0_i32_1 = arith.constant 0 : i32
    return %c0_i32, %c0_i32_0 : i32, i32
  }
  func.func @transform_5(%arg0: i32, %arg1: memref<3xi32, #tpu.memory_space<smem>>, %arg2: memref<80xi32, #tpu.memory_space<smem>>, %arg3: memref<80xi32, #tpu.memory_space<smem>>) -> (i32, i32) {
    %c0_i32 = arith.constant 0 : i32
    %c0_i32_0 = arith.constant 0 : i32
    return %arg0, %c0_i32 : i32, i32
  }
  func.func @transform_6(%arg0: i32, %arg1: memref<3xi32, #tpu.memory_space<smem>>, %arg2: memref<80xi32, #tpu.memory_space<smem>>, %arg3: memref<80xi32, #tpu.memory_space<smem>>) -> (i32, i32) {
    %c0_i32 = arith.constant 0 : i32
    %c0_i32_0 = arith.constant 0 : i32
    return %arg0, %c0_i32 : i32, i32
  }
}

module attributes {stable_mosaic.version = 11 : i64} {
  func.func @_head_kernel(%arg0: memref<8x128xf32, #tpu.memory_space<vmem>>, %arg1: memref<128x128xf32, #tpu.memory_space<vmem>>, %arg2: memref<1x128xf32, #tpu.memory_space<vmem>>, %arg3: memref<128x64xf32, #tpu.memory_space<vmem>>, %arg4: memref<1x64xf32, #tpu.memory_space<vmem>>, %arg5: memref<64x128xf32, #tpu.memory_space<vmem>>, %arg6: memref<1x128xf32, #tpu.memory_space<vmem>>, %arg7: memref<8x128xf32, #tpu.memory_space<vmem>>) attributes {dimension_semantics = [], scalar_prefetch = 0 : i64, scratch_operands = 0 : i64, tpu.core_type = #tpu.core_type<tc>} {
    %c0 = arith.constant 0 : index
    %c0_0 = arith.constant 0 : index
    %0 = vector.load %arg0[%c0, %c0_0] : memref<8x128xf32, #tpu.memory_space<vmem>>, vector<8x128xf32>
    %c0_1 = arith.constant 0 : index
    %c0_2 = arith.constant 0 : index
    %1 = vector.load %arg1[%c0_1, %c0_2] : memref<128x128xf32, #tpu.memory_space<vmem>>, vector<128x128xf32>
    %cst = arith.constant dense<0.000000e+00> : vector<8x128xf32>
    %2 = tpu.matmul %0, %1, %cst {dimension_numbers = #tpu.dot_dimension_numbers<[1], [0], [0], [1], [0, 0, 1, 1], [], []>} : vector<8x128xf32>, vector<128x128xf32>, vector<8x128xf32> -> vector<8x128xf32>
    %c0_3 = arith.constant 0 : index
    %c0_4 = arith.constant 0 : index
    %3 = vector.load %arg2[%c0_3, %c0_4] : memref<1x128xf32, #tpu.memory_space<vmem>>, vector<1x128xf32>
    %4 = vector.broadcast %3 : vector<1x128xf32> to vector<8x128xf32>
    %5 = arith.addf %2, %4 : vector<8x128xf32>
    %cst_5 = arith.constant 0.000000e+00 : f32
    %6 = vector.broadcast %cst_5 : f32 to vector<8x128xf32>
    %7 = arith.maximumf %5, %6 : vector<8x128xf32>
    %c0_6 = arith.constant 0 : index
    %c0_7 = arith.constant 0 : index
    %8 = vector.load %arg3[%c0_6, %c0_7] : memref<128x64xf32, #tpu.memory_space<vmem>>, vector<128x64xf32>
    %cst_8 = arith.constant dense<0.000000e+00> : vector<8x64xf32>
    %9 = tpu.matmul %7, %8, %cst_8 {dimension_numbers = #tpu.dot_dimension_numbers<[1], [0], [0], [1], [0, 0, 1, 1], [], []>} : vector<8x128xf32>, vector<128x64xf32>, vector<8x64xf32> -> vector<8x64xf32>
    %c0_9 = arith.constant 0 : index
    %c0_10 = arith.constant 0 : index
    %10 = vector.load %arg4[%c0_9, %c0_10] : memref<1x64xf32, #tpu.memory_space<vmem>>, vector<1x64xf32>
    %11 = vector.broadcast %10 : vector<1x64xf32> to vector<8x64xf32>
    %12 = arith.addf %9, %11 : vector<8x64xf32>
    %cst_11 = arith.constant 0.000000e+00 : f32
    %13 = vector.broadcast %cst_11 : f32 to vector<8x64xf32>
    %14 = arith.maximumf %12, %13 : vector<8x64xf32>
    %c0_12 = arith.constant 0 : index
    %c0_13 = arith.constant 0 : index
    %15 = vector.load %arg5[%c0_12, %c0_13] : memref<64x128xf32, #tpu.memory_space<vmem>>, vector<64x128xf32>
    %cst_14 = arith.constant dense<0.000000e+00> : vector<8x128xf32>
    %16 = tpu.matmul %14, %15, %cst_14 {dimension_numbers = #tpu.dot_dimension_numbers<[1], [0], [0], [1], [0, 0, 1, 1], [], []>} : vector<8x64xf32>, vector<64x128xf32>, vector<8x128xf32> -> vector<8x128xf32>
    %c0_15 = arith.constant 0 : index
    %c0_16 = arith.constant 0 : index
    %17 = vector.load %arg6[%c0_15, %c0_16] : memref<1x128xf32, #tpu.memory_space<vmem>>, vector<1x128xf32>
    %18 = vector.broadcast %17 : vector<1x128xf32> to vector<8x128xf32>
    %19 = arith.addf %16, %18 : vector<8x128xf32>
    %20 = arith.negf %19 : vector<8x128xf32>
    %21 = math.exp %20 : vector<8x128xf32>
    %cst_17 = arith.constant 1.000000e+00 : f32
    %22 = vector.broadcast %cst_17 : f32 to vector<8x128xf32>
    %23 = arith.addf %22, %21 : vector<8x128xf32>
    %24 = arith.divf %22, %23 : vector<8x128xf32>
    %c0_18 = arith.constant 0 : index
    %c0_19 = arith.constant 0 : index
    %25 = vector.load %arg7[%c0_18, %c0_19] : memref<8x128xf32, #tpu.memory_space<vmem>>, vector<8x128xf32>
    tpu.vector_store %arg7[%c0_18, %c0_19], %24 {strides = array<i32>} : memref<8x128xf32, #tpu.memory_space<vmem>>, vector<8x128xf32>,
    return
  }
}

</mosaic_0001>

<llo_original>
// kernel: net_forward.4
$region0: #{net_forward.4}
  #allocation0 [shape = 'u32[]', space=smem, size = 0x4, offset = 0x4, fixed_abs, tag = 'smem constant byte address 0x4 - core index']
  #allocation1 [shape = 'u32[144,128]{1,0:T(1,128)}', space=vmem, size = 0x12000, scoped, tag = 'internal scratch']
  #allocation2 [shape = 'f32[512,128]{1,0:T(8,128)}', space=vmem, size = 0x40000, scoped, tag = 'scratch operand']
  #allocation3 [shape = 's32[1]{0}', space=sflag, size = 0x4, scoped, tag = 'scoped memory for net_forward.4']
  #allocation4 [shape = 'u8[512]{0}', space=smem, size = 0x200, scoped, tag = 'prefetched SMEM operand 0']
  #allocation5 [shape = 'u8[512]{0}', space=smem, size = 0x200, scoped, tag = 'prefetched SMEM operand 1']
  #allocation6 [shape = 'u8[512]{0}', space=smem, size = 0x200, scoped, tag = 'prefetched SMEM operand 2']
  %s0 = inlined_call_operand.vmem [shape: s32[3], index: 0, kind: input, shape index: {}]
  %s1 = inlined_call_operand.vmem [shape: s32[80], index: 1, kind: input, shape index: {}]
  %s2 = inlined_call_operand.vmem [shape: s32[80], index: 2, kind: input, shape index: {}]
  %s3 = inlined_call_operand.vmem [shape: f32[1024,128], index: 3, kind: input, shape index: {}]
  %s4 = inlined_call_operand.vmem [shape: f32[1024,1], index: 4, kind: input, shape index: {}]
  %s5 = inlined_call_operand.vmem [shape: bf16[256,128], index: 5, kind: input, shape index: {}]
  %s6 = inlined_call_operand.vmem [shape: f32[1,128], index: 6, kind: input, shape index: {}]
  %s7 = inlined_call_operand.vmem [shape: f32[1,128], index: 7, kind: input, shape index: {}]
  %s8 = inlined_call_operand.vmem [shape: bf16[1024,128], index: 8, kind: output, shape index: {0}]
  %s9 = inlined_call_operand.vmem [shape: f32[1024,1], index: 9, kind: output, shape index: {1}]
  %10 = xla_tuple %s8, %s9
  %s11 = sld [smem:[#allocation0]]
  $region68: #{net_forward.4} parent=0
    _
  %s13 = ssub.s32 1, %s11
  %s14 = scalar_select 0, %s13, %s11
  %s15 = sshll.u32 %s0, 4
  %s16 = int_to_ptr.vmem [resolvable:$true] %s15
  %18 = dma.vmem_to_smem %s16, 16, [#allocation4], [#allocation3]
  %s19 = sshll.u32 %s1, 4
  %s20 = int_to_ptr.vmem [resolvable:$true] %s19
  %22 = dma.vmem_to_smem %s20, 16, [#allocation5], [#allocation3]
  %s23 = sshll.u32 %s2, 4
  %s24 = int_to_ptr.vmem [resolvable:$true] %s23
  %26 = dma.vmem_to_smem %s24, 16, [#allocation6], [#allocation3]
  %27 = dma.done [#allocation3], 48
  %28 = sfence
  loop: start=0, step=1, limit=4
  $region2: #{net_forward.4} parent=0 // loop_pre_header
    _
  $region3: #{net_forward.4} parent=0 // loop_header
    %s30 = sphi 0, %s34
    %p31 = scmp.ge.s32.totalorder %s30, 4
    %s38 = sphi 0, %s38
    %s40 = sphi 0, %s38
    %s41 = sphi 0, %s40
    %s55 = sphi 0, %s41
    %s61 = sphi 0, %s63
    %s64 = sphi 0, %s61
    %s65 = sphi 0, %s64
    %s81 = sphi 0, %s65
    %s85 = sphi 0, %s85
    %s87 = sphi 0, %s85
    %s88 = sphi 0, %s87
    %s102 = sphi 0, %s88
    %s106 = sphi 0, %s106
    %s108 = sphi 0, %s106
    %s109 = sphi 0, %s108
    %s123 = sphi 0, %s109
    %s127 = sphi 0, %s127
    %s129 = sphi 0, %s127
    %s130 = sphi 0, %s129
    %s144 = sphi 0, %s130
    %s150 = sphi 0, %s152
    %s153 = sphi 0, %s150
    %s154 = sphi 0, %s153
    %s170 = sphi 0, %s154
    %s176 = sphi 0, %s178
    %s179 = sphi 0, %s176
    %s180 = sphi 0, %s179
    %s196 = sphi 0, %s180
  $region4: #{net_forward.4} parent=0 // loop_header_branch
    %33 = sbr.rel (%p31) target = $region8
  $region5: #{net_forward.4} parent=0 // loop_body
    %s35 = ssub.s32 %s30, 1
    %s36 = ssub.s32 %s30, 2
    %s37 = sadd.s32 %s30, 1
    %s39 = sadd.s32 %s38, 1
    %p42 = scmp.eq.s32.totalorder %s30, 1
    %p43 = scmp.ne.s32.totalorder %s38, %s40
    %p44 = scmp.eq.s32.totalorder %s30, 0
    %p45 = por %p43, %p44
    %p46 = scmp.ne.s32.totalorder %s38, %s40
    %p47 = scmp.eq.s32.totalorder %s35, 1
    %p48 = por %p46, %p47
    %p49 = scmp.ne.s32.totalorder %s40, %s41
    %p50 = scmp.eq.s32.totalorder %s35, 0
    %p51 = por %p49, %p50
    %p52 = scmp.ne.s32.totalorder %s40, %s41
    %p53 = scmp.eq.s32.totalorder %s36, 1
    %p54 = por %p52, %p53
    %p56 = scmp.ne.s32.totalorder %s41, %s55
    %p57 = scmp.eq.s32.totalorder %s36, 0
    %p58 = por %p56, %p57
    %s59 = ssub.s32 %s30, %s37
    %p60 = scmp.eq.s32.totalorder %s59, 0
    %s62 = sadd.s32 %s61, 1
    %s63 = scalar_select %p60, %s61, %s62
    %p66 = pneg %p60
    %p67 = scmp.eq.s32.totalorder %s30, 1
    %p68 = por %p66, %p67
    %p69 = scmp.ne.s32.totalorder %s61, %s64
    %p70 = scmp.eq.s32.totalorder %s30, 0
    %p71 = por %p69, %p70
    %p72 = scmp.ne.s32.totalorder %s61, %s64
    %p73 = scmp.eq.s32.totalorder %s35, 1
    %p74 = por %p72, %p73
    %p75 = scmp.ne.s32.totalorder %s64, %s65
    %p76 = scmp.eq.s32.totalorder %s35, 0
    %p77 = por %p75, %p76
    %p78 = scmp.ne.s32.totalorder %s64, %s65
    %p79 = scmp.eq.s32.totalorder %s36, 1
    %p80 = por %p78, %p79
    %p82 = scmp.ne.s32.totalorder %s65, %s81
    %p83 = scmp.eq.s32.totalorder %s36, 0
    %p84 = por %p82, %p83
    %s86 = sadd.s32 %s85, 1
    %p89 = scmp.eq.s32.totalorder %s30, 1
    %p90 = scmp.ne.s32.totalorder %s85, %s87
    %p91 = scmp.eq.s32.totalorder %s30, 0
    %p92 = por %p90, %p91
    %p93 = scmp.ne.s32.totalorder %s85, %s87
    %p94 = scmp.eq.s32.totalorder %s35, 1
    %p95 = por %p93, %p94
    %p96 = scmp.ne.s32.totalorder %s87, %s88
    %p97 = scmp.eq.s32.totalorder %s35, 0
    %p98 = por %p96, %p97
    %p99 = scmp.ne.s32.totalorder %s87, %s88
    %p100 = scmp.eq.s32.totalorder %s36, 1
    %p101 = por %p99, %p100
    %p103 = scmp.ne.s32.totalorder %s88, %s102
    %p104 = scmp.eq.s32.totalorder %s36, 0
    %p105 = por %p103, %p104
    %s107 = sadd.s32 %s106, 1
    %p110 = scmp.eq.s32.totalorder %s30, 1
    %p111 = scmp.ne.s32.totalorder %s106, %s108
    %p112 = scmp.eq.s32.totalorder %s30, 0
    %p113 = por %p111, %p112
    %p114 = scmp.ne.s32.totalorder %s106, %s108
    %p115 = scmp.eq.s32.totalorder %s35, 1
    %p116 = por %p114, %p115
    %p117 = scmp.ne.s32.totalorder %s108, %s109
    %p118 = scmp.eq.s32.totalorder %s35, 0
    %p119 = por %p117, %p118
    %p120 = scmp.ne.s32.totalorder %s108, %s109
    %p121 = scmp.eq.s32.totalorder %s36, 1
    %p122 = por %p120, %p121
    %p124 = scmp.ne.s32.totalorder %s109, %s123
    %p125 = scmp.eq.s32.totalorder %s36, 0
    %p126 = por %p124, %p125
    %s128 = sadd.s32 %s127, 1
    %p131 = scmp.eq.s32.totalorder %s30, 1
    %p132 = scmp.ne.s32.totalorder %s127, %s129
    %p133 = scmp.eq.s32.totalorder %s30, 0
    %p134 = por %p132, %p133
    %p135 = scmp.ne.s32.totalorder %s127, %s129
    %p136 = scmp.eq.s32.totalorder %s35, 1
    %p137 = por %p135, %p136
    %p138 = scmp.ne.s32.totalorder %s129, %s130
    %p139 = scmp.eq.s32.totalorder %s35, 0
    %p140 = por %p138, %p139
    %p141 = scmp.ne.s32.totalorder %s129, %s130
    %p142 = scmp.eq.s32.totalorder %s36, 1
    %p143 = por %p141, %p142
    %p145 = scmp.ne.s32.totalorder %s130, %s144
    %p146 = scmp.eq.s32.totalorder %s36, 0
    %p147 = por %p145, %p146
    %s148 = ssub.s32 %s30, %s37
    %p149 = scmp.eq.s32.totalorder %s148, 0
    %s151 = sadd.s32 %s150, 1
    %s152 = scalar_select %p149, %s150, %s151
    %p155 = pneg %p149
    %p156 = scmp.eq.s32.totalorder %s30, 1
    %p157 = por %p155, %p156
    %p158 = scmp.ne.s32.totalorder %s150, %s153
    %p159 = scmp.eq.s32.totalorder %s30, 0
    %p160 = por %p158, %p159
    %p161 = scmp.ne.s32.totalorder %s150, %s153
    %p162 = scmp.eq.s32.totalorder %s35, 1
    %p163 = por %p161, %p162
    %p164 = scmp.ne.s32.totalorder %s153, %s154
    %p165 = scmp.eq.s32.totalorder %s35, 0
    %p166 = por %p164, %p165
    %p167 = scmp.ne.s32.totalorder %s153, %s154
    %p168 = scmp.eq.s32.totalorder %s36, 1
    %p169 = por %p167, %p168
    %p171 = scmp.ne.s32.totalorder %s154, %s170
    %p172 = scmp.eq.s32.totalorder %s36, 0
    %p173 = por %p171, %p172
    %s174 = ssub.s32 %s30, %s37
    %p175 = scmp.eq.s32.totalorder %s174, 0
    %s177 = sadd.s32 %s176, 1
    %s178 = scalar_select %p175, %s176, %s177
    %p181 = pneg %p175
    %p182 = scmp.eq.s32.totalorder %s30, 1
    %p183 = por %p181, %p182
    %p184 = scmp.ne.s32.totalorder %s176, %s179
    %p185 = scmp.eq.s32.totalorder %s30, 0
    %p186 = por %p184, %p185
    %p187 = scmp.ne.s32.totalorder %s176, %s179
    %p188 = scmp.eq.s32.totalorder %s35, 1
    %p189 = por %p187, %p188
    %p190 = scmp.ne.s32.totalorder %s179, %s180
    %p191 = scmp.eq.s32.totalorder %s35, 0
    %p192 = por %p190, %p191
    %p193 = scmp.ne.s32.totalorder %s179, %s180
    %p194 = scmp.eq.s32.totalorder %s36, 1
    %p195 = por %p193, %p194
    %p197 = scmp.ne.s32.totalorder %s180, %s196
    %p198 = scmp.eq.s32.totalorder %s36, 0
    %p199 = por %p197, %p198
    %p200 = scmp.le.s32.totalorder 1, %s30
    %p201 = scmp.lt.s32.totalorder %s30, 3
    %p202 = pnand %p200, %p201
    %p203 = pneg %p202
    // Predicated region
    $region9: #{net_forward.4} parent=5 // pred_check
      _
    $region10: #{net_forward.4} parent=5 // pred_check_branch
      %205 = sbr.rel (%p202) target = $region12
    $region11: #{net_forward.4} parent=5 // pred_region
      %s206 = ssub.s32 %s30, 1
      // Predicated region
      $region13: #{net_forward.4} parent=11 // pred_check
        %p207 = pneg %p51
      $region14: #{net_forward.4} parent=11 // pred_check_branch
        %209 = sbr.rel (%p207) target = $region16
      $region15: #{net_forward.4} parent=11 // pred_region
        _
      $region16: #{net_forward.4} parent=11 // pred_fallthru
        _
      // Predicated region
      $region17: #{net_forward.4} parent=11 // pred_check
        %p210 = pneg %p98
      $region18: #{net_forward.4} parent=11 // pred_check_branch
        %212 = sbr.rel (%p210) target = $region20
      $region19: #{net_forward.4} parent=11 // pred_region
        _
      $region20: #{net_forward.4} parent=11 // pred_fallthru
        _
      // Predicated region
      $region21: #{net_forward.4} parent=11 // pred_check
        %p213 = pneg %p119
      $region22: #{net_forward.4} parent=11 // pred_check_branch
        %215 = sbr.rel (%p213) target = $region24
      $region23: #{net_forward.4} parent=11 // pred_region
        _
      $region24: #{net_forward.4} parent=11 // pred_fallthru
        _
      // Predicated region
      $region25: #{net_forward.4} parent=11 // pred_check
        %p216 = pneg %p140
      $region26: #{net_forward.4} parent=11 // pred_check_branch
        %218 = sbr.rel (%p216) target = $region28
      $region27: #{net_forward.4} parent=11 // pred_region
        _
      $region28: #{net_forward.4} parent=11 // pred_fallthru
        _
    $region12: #{net_forward.4} parent=5 // pred_fallthru
      _
    %p219 = scmp.lt.s32.totalorder %s30, 2
    // Predicated region
    $region29: #{net_forward.4} parent=5 // pred_check
      %p220 = pneg %p219
    $region30: #{net_forward.4} parent=5 // pred_check_branch
      %222 = sbr.rel (%p220) target = $region32
    $region31: #{net_forward.4} parent=5 // pred_region
      // Predicated region
      $region33: #{net_forward.4} parent=31 // pred_check
        %p223 = pneg %p71
      $region34: #{net_forward.4} parent=31 // pred_check_branch
        %225 = sbr.rel (%p223) target = $region36
      $region35: #{net_forward.4} parent=31 // pred_region
        %s226 = smul.u32 64, %s30
        %p227 = scmp.lt.s32.totalorder %s226, 127
        %s228 = scalar_select %p227, %s226, 127
        %s229 = smul.addr %s228, 8
        %s230 = scalar_lea.vmem %s4, %s229
        %s231 = smul.u32 64, %s30
      $region36: #{net_forward.4} parent=31 // pred_fallthru
        _
    $region32: #{net_forward.4} parent=5 // pred_fallthru
      _
    %p232 = scmp.le.s32.totalorder 1, %s30
    %p233 = scmp.lt.s32.totalorder %s30, 3
    %p234 = pnand %p232, %p233
    %p235 = pneg %p234
    // Predicated region
    $region37: #{net_forward.4} parent=5 // pred_check
      _
    $region38: #{net_forward.4} parent=5 // pred_check_branch
      %237 = sbr.rel (%p234) target = $region40
    $region39: #{net_forward.4} parent=5 // pred_region
      %s238 = ssub.s32 %s30, 1
      %p239 = pneg %p51
      %p240 = pneg %p48
      %s241 = smul.u32 64, %s35
      %p242 = scmp.lt.s32.totalorder %s241, 127
      %s243 = scalar_select %p242, %s241, 127
      %s244 = smul.addr %s243, 8
      %s245 = scalar_lea.vmem %s4, %s244
      %p246 = pneg %p77
      %p247 = pneg %p74
      %p248 = pneg %p98
      %p249 = pneg %p95
      %p250 = pneg %p119
      %p251 = pneg %p116
      %p252 = pneg %p140
      %p253 = pneg %p137
      %p254 = pneg %p166
      %p255 = pneg %p163
      %s256 = smul.u32 64, %s35
      %p257 = scmp.lt.s32.totalorder %s256, 127
      %s258 = scalar_select %p257, %s256, 127
      %s259 = smul.addr %s258, 4
      %s260 = scalar_lea.vmem %s8, %s259
      %p261 = pneg %p192
      %p262 = pneg %p189
      %s263 = smul.u32 64, %s35
      %p264 = scmp.lt.s32.totalorder %s263, 127
      %s265 = scalar_select %p264, %s263, 127
      %s266 = smul.addr %s265, 8
      %s267 = scalar_lea.vmem %s9, %s266
      %s268 = smul.u32 64, %s35
      %p269 = scmp.lt.s32.totalorder %s268, 127
      %s270 = scalar_select %p269, %s268, 127
      %s271 = smul.addr %s270, 8
      %s272 = scalar_lea.vmem %s4, %s271
      %s273 = smul.u32 64, %s35
      %s274 = smul.u32 64, %s35
      %p275 = scmp.lt.s32.totalorder %s274, 127
      %s276 = scalar_select %p275, %s274, 127
      %s277 = smul.addr %s276, 4
      %s278 = scalar_lea.vmem %s8, %s277
      %s279 = smul.u32 64, %s35
      %s280 = smul.u32 64, %s35
      %p281 = scmp.lt.s32.totalorder %s280, 127
      %s282 = scalar_select %p281, %s280, 127
      %s283 = smul.addr %s282, 8
      %s284 = scalar_lea.vmem %s9, %s283
      %s285 = smul.u32 64, %s35
      %287 = vst [vmem:[#allocation2] sm:$0xff] 0.0
      %288 = vst [vmem:[#allocation2 + $0x8] sm:$0xff] 0.0
      %289 = vst [vmem:[#allocation2 + $0x10] sm:$0xff] 0.0
      %290 = vst [vmem:[#allocation2 + $0x18] sm:$0xff] 0.0
      %291 = vst [vmem:[#allocation2 + $0x20] sm:$0xff] 0.0
      %292 = vst [vmem:[#allocation2 + $0x28] sm:$0xff] 0.0
      %293 = vst [vmem:[#allocation2 + $0x30] sm:$0xff] 0.0
      %294 = vst [vmem:[#allocation2 + $0x38] sm:$0xff] 0.0
      %295 = vst [vmem:[#allocation2 + $0x40] sm:$0xff] 0.0
      %296 = vst [vmem:[#allocation2 + $0x48] sm:$0xff] 0.0
      %297 = vst [vmem:[#allocation2 + $0x50] sm:$0xff] 0.0
      %298 = vst [vmem:[#allocation2 + $0x58] sm:$0xff] 0.0
      %299 = vst [vmem:[#allocation2 + $0x60] sm:$0xff] 0.0
      %300 = vst [vmem:[#allocation2 + $0x68] sm:$0xff] 0.0
      %301 = vst [vmem:[#allocation2 + $0x70] sm:$0xff] 0.0
      %302 = vst [vmem:[#allocation2 + $0x78] sm:$0xff] 0.0
      %303 = vst [vmem:[#allocation2 + $0x80] sm:$0xff] 0.0
      %304 = vst [vmem:[#allocation2 + $0x88] sm:$0xff] 0.0
      %305 = vst [vmem:[#allocation2 + $0x90] sm:$0xff] 0.0
      %306 = vst [vmem:[#allocation2 + $0x98] sm:$0xff] 0.0
      %307 = vst [vmem:[#allocation2 + $0xa0] sm:$0xff] 0.0
      %308 = vst [vmem:[#allocation2 + $0xa8] sm:$0xff] 0.0
      %309 = vst [vmem:[#allocation2 + $0xb0] sm:$0xff] 0.0
      %310 = vst [vmem:[#allocation2 + $0xb8] sm:$0xff] 0.0
      %311 = vst [vmem:[#allocation2 + $0xc0] sm:$0xff] 0.0
      %312 = vst [vmem:[#allocation2 + $0xc8] sm:$0xff] 0.0
      %313 = vst [vmem:[#allocation2 + $0xd0] sm:$0xff] 0.0
      %314 = vst [vmem:[#allocation2 + $0xd8] sm:$0xff] 0.0
      %315 = vst [vmem:[#allocation2 + $0xe0] sm:$0xff] 0.0
      %316 = vst [vmem:[#allocation2 + $0xe8] sm:$0xff] 0.0
      %317 = vst [vmem:[#allocation2 + $0xf0] sm:$0xff] 0.0
      %318 = vst [vmem:[#allocation2 + $0xf8] sm:$0xff] 0.0
      %319 = vst [vmem:[#allocation2 + $0x100] sm:$0xff] 0.0
      %320 = vst [vmem:[#allocation2 + $0x108] sm:$0xff] 0.0
      %321 = vst [vmem:[#allocation2 + $0x110] sm:$0xff] 0.0
      %322 = vst [vmem:[#allocation2 + $0x118] sm:$0xff] 0.0
      %323 = vst [vmem:[#allocation2 + $0x120] sm:$0xff] 0.0
      %324 = vst [vmem:[#allocation2 + $0x128] sm:$0xff] 0.0
      %325 = vst [vmem:[#allocation2 + $0x130] sm:$0xff] 0.0
      %326 = vst [vmem:[#allocation2 + $0x138] sm:$0xff] 0.0
      %327 = vst [vmem:[#allocation2 + $0x140] sm:$0xff] 0.0
      %328 = vst [vmem:[#allocation2 + $0x148] sm:$0xff] 0.0
      %329 = vst [vmem:[#allocation2 + $0x150] sm:$0xff] 0.0
      %330 = vst [vmem:[#allocation2 + $0x158] sm:$0xff] 0.0
      %331 = vst [vmem:[#allocation2 + $0x160] sm:$0xff] 0.0
      %332 = vst [vmem:[#allocation2 + $0x168] sm:$0xff] 0.0
      %333 = vst [vmem:[#allocation2 + $0x170] sm:$0xff] 0.0
      %334 = vst [vmem:[#allocation2 + $0x178] sm:$0xff] 0.0
      %335 = vst [vmem:[#allocation2 + $0x180] sm:$0xff] 0.0
      %336 = vst [vmem:[#allocation2 + $0x188] sm:$0xff] 0.0
      %337 = vst [vmem:[#allocation2 + $0x190] sm:$0xff] 0.0
      %338 = vst [vmem:[#allocation2 + $0x198] sm:$0xff] 0.0
      %339 = vst [vmem:[#allocation2 + $0x1a0] sm:$0xff] 0.0
      %340 = vst [vmem:[#allocation2 + $0x1a8] sm:$0xff] 0.0
      %341 = vst [vmem:[#allocation2 + $0x1b0] sm:$0xff] 0.0
      %342 = vst [vmem:[#allocation2 + $0x1b8] sm:$0xff] 0.0
      %343 = vst [vmem:[#allocation2 + $0x1c0] sm:$0xff] 0.0
      %344 = vst [vmem:[#allocation2 + $0x1c8] sm:$0xff] 0.0
      %345 = vst [vmem:[#allocation2 + $0x1d0] sm:$0xff] 0.0
      %346 = vst [vmem:[#allocation2 + $0x1d8] sm:$0xff] 0.0
      %347 = vst [vmem:[#allocation2 + $0x1e0] sm:$0xff] 0.0
      %348 = vst [vmem:[#allocation2 + $0x1e8] sm:$0xff] 0.0
      %349 = vst [vmem:[#allocation2 + $0x1f0] sm:$0xff] 0.0
      %350 = vst [vmem:[#allocation2 + $0x1f8] sm:$0xff] 0.0
      %s351 = sld [smem:[#allocation4 + %s35]]
      %s352 = sadd.s32 %s35, 1
      %s353 = sld [smem:[#allocation4 + %s352]]
      // While loop
      $region41: #{net_forward.4} parent=39 // loop_pre_header
        _
      $region42: #{net_forward.4} parent=39 // loop_header
        %s355 = sphi %s351, %s357
        %p356 = scmp.ge.s32.totalorder %s355, %s353
      $region43: #{net_forward.4} parent=39 // loop_header_branch
        %359 = sbr.rel (%p356) target = $region47
      $region44: #{net_forward.4} parent=39 // loop_body
        %s360 = sld [smem:[#allocation5 + %s355]]
        %s361 = sld [smem:[#allocation6 + %s355]]
        %s362 = scalar_lea.vmem %s3, %s360
        %v363 = vld [vmem:[%s362] sm:$0x1]
        %s364 = scalar_lea.vmem [#allocation2], %s361
        %v365 = vld [vmem:[%s364] sm:$0x1]
        %v366 = vadd.f32 %v365, %v363
        %367 = vst [vmem:[%s364] sm:$0x1] %v366
      $region45: #{net_forward.4} parent=39 // loop_footer
        %s357 = sadd.s32 %s355, 1
      $region46: #{net_forward.4} parent=39 // loop_footer_branch
        %354 = sbr.rel target = $region42
      $region47: #{net_forward.4} parent=39 // loop_exit
        _
      %v368 = vld [vmem:[#allocation2] sm:$0xff]
      %v369 = vld [vmem:[#allocation2 + $0x8] sm:$0xff]
      %v370 = vld [vmem:[#allocation2 + $0x10] sm:$0xff]
      %v371 = vld [vmem:[#allocation2 + $0x18] sm:$0xff]
      %v372 = vld [vmem:[#allocation2 + $0x20] sm:$0xff]
      %v373 = vld [vmem:[#allocation2 + $0x28] sm:$0xff]
      %v374 = vld [vmem:[#allocation2 + $0x30] sm:$0xff]
      %v375 = vld [vmem:[#allocation2 + $0x38] sm:$0xff]
      %v376 = vld [vmem:[#allocation2 + $0x40] sm:$0xff]
      %v377 = vld [vmem:[#allocation2 + $0x48] sm:$0xff]
      %v378 = vld [vmem:[#allocation2 + $0x50] sm:$0xff]
      %v379 = vld [vmem:[#allocation2 + $0x58] sm:$0xff]
      %v380 = vld [vmem:[#allocation2 + $0x60] sm:$0xff]
      %v381 = vld [vmem:[#allocation2 + $0x68] sm:$0xff]
      %v382 = vld [vmem:[#allocation2 + $0x70] sm:$0xff]
      %v383 = vld [vmem:[#allocation2 + $0x78] sm:$0xff]
      %v384 = vld [vmem:[#allocation2 + $0x80] sm:$0xff]
      %v385 = vld [vmem:[#allocation2 + $0x88] sm:$0xff]
      %v386 = vld [vmem:[#allocation2 + $0x90] sm:$0xff]
      %v387 = vld [vmem:[#allocation2 + $0x98] sm:$0xff]
      %v388 = vld [vmem:[#allocation2 + $0xa0] sm:$0xff]
      %v389 = vld [vmem:[#allocation2 + $0xa8] sm:$0xff]
      %v390 = vld [vmem:[#allocation2 + $0xb0] sm:$0xff]
      %v391 = vld [vmem:[#allocation2 + $0xb8] sm:$0xff]
      %v392 = vld [vmem:[#allocation2 + $0xc0] sm:$0xff]
      %v393 = vld [vmem:[#allocation2 + $0xc8] sm:$0xff]
      %v394 = vld [vmem:[#allocation2 + $0xd0] sm:$0xff]
      %v395 = vld [vmem:[#allocation2 + $0xd8] sm:$0xff]
      %v396 = vld [vmem:[#allocation2 + $0xe0] sm:$0xff]
      %v397 = vld [vmem:[#allocation2 + $0xe8] sm:$0xff]
      %v398 = vld [vmem:[#allocation2 + $0xf0] sm:$0xff]
      %v399 = vld [vmem:[#allocation2 + $0xf8] sm:$0xff]
      %v400 = vld [vmem:[#allocation2 + $0x100] sm:$0xff]
      %v401 = vld [vmem:[#allocation2 + $0x108] sm:$0xff]
      %v402 = vld [vmem:[#allocation2 + $0x110] sm:$0xff]
      %v403 = vld [vmem:[#allocation2 + $0x118] sm:$0xff]
      %v404 = vld [vmem:[#allocation2 + $0x120] sm:$0xff]
      %v405 = vld [vmem:[#allocation2 + $0x128] sm:$0xff]
      %v406 = vld [vmem:[#allocation2 + $0x130] sm:$0xff]
      %v407 = vld [vmem:[#allocation2 + $0x138] sm:$0xff]
      %v408 = vld [vmem:[#allocation2 + $0x140] sm:$0xff]
      %v409 = vld [vmem:[#allocation2 + $0x148] sm:$0xff]
      %v410 = vld [vmem:[#allocation2 + $0x150] sm:$0xff]
      %v411 = vld [vmem:[#allocation2 + $0x158] sm:$0xff]
      %v412 = vld [vmem:[#allocation2 + $0x160] sm:$0xff]
      %v413 = vld [vmem:[#allocation2 + $0x168] sm:$0xff]
      %v414 = vld [vmem:[#allocation2 + $0x170] sm:$0xff]
      %v415 = vld [vmem:[#allocation2 + $0x178] sm:$0xff]
      %v416 = vld [vmem:[#allocation2 + $0x180] sm:$0xff]
      %v417 = vld [vmem:[#allocation2 + $0x188] sm:$0xff]
      %v418 = vld [vmem:[#allocation2 + $0x190] sm:$0xff]
      %v419 = vld [vmem:[#allocation2 + $0x198] sm:$0xff]
      %v420 = vld [vmem:[#allocation2 + $0x1a0] sm:$0xff]
      %v421 = vld [vmem:[#allocation2 + $0x1a8] sm:$0xff]
      %v422 = vld [vmem:[#allocation2 + $0x1b0] sm:$0xff]
      %v423 = vld [vmem:[#allocation2 + $0x1b8] sm:$0xff]
      %v424 = vld [vmem:[#allocation2 + $0x1c0] sm:$0xff]
      %v425 = vld [vmem:[#allocation2 + $0x1c8] sm:$0xff]
      %v426 = vld [vmem:[#allocation2 + $0x1d0] sm:$0xff]
      %v427 = vld [vmem:[#allocation2 + $0x1d8] sm:$0xff]
      %v428 = vld [vmem:[#allocation2 + $0x1e0] sm:$0xff]
      %v429 = vld [vmem:[#allocation2 + $0x1e8] sm:$0xff]
      %v430 = vld [vmem:[#allocation2 + $0x1f0] sm:$0xff]
      %v431 = vld [vmem:[#allocation2 + $0x1f8] sm:$0xff]
      %v432 = vld [vmem:[%s272] sm:$0xff]
      %v433 = vld [vmem:[%s272 + $0x8] sm:$0xff]
      %v434 = vld [vmem:[%s272 + $0x10] sm:$0xff]
      %v435 = vld [vmem:[%s272 + $0x18] sm:$0xff]
      %v436 = vld [vmem:[%s272 + $0x20] sm:$0xff]
      %v437 = vld [vmem:[%s272 + $0x28] sm:$0xff]
      %v438 = vld [vmem:[%s272 + $0x30] sm:$0xff]
      %v439 = vld [vmem:[%s272 + $0x38] sm:$0xff]
      %v440 = vld [vmem:[%s272 + $0x40] sm:$0xff]
      %v441 = vld [vmem:[%s272 + $0x48] sm:$0xff]
      %v442 = vld [vmem:[%s272 + $0x50] sm:$0xff]
      %v443 = vld [vmem:[%s272 + $0x58] sm:$0xff]
      %v444 = vld [vmem:[%s272 + $0x60] sm:$0xff]
      %v445 = vld [vmem:[%s272 + $0x68] sm:$0xff]
      %v446 = vld [vmem:[%s272 + $0x70] sm:$0xff]
      %v447 = vld [vmem:[%s272 + $0x78] sm:$0xff]
      %v448 = vld [vmem:[%s272 + $0x80] sm:$0xff]
      %v449 = vld [vmem:[%s272 + $0x88] sm:$0xff]
      %v450 = vld [vmem:[%s272 + $0x90] sm:$0xff]
      %v451 = vld [vmem:[%s272 + $0x98] sm:$0xff]
      %v452 = vld [vmem:[%s272 + $0xa0] sm:$0xff]
      %v453 = vld [vmem:[%s272 + $0xa8] sm:$0xff]
      %v454 = vld [vmem:[%s272 + $0xb0] sm:$0xff]
      %v455 = vld [vmem:[%s272 + $0xb8] sm:$0xff]
      %v456 = vld [vmem:[%s272 + $0xc0] sm:$0xff]
      %v457 = vld [vmem:[%s272 + $0xc8] sm:$0xff]
      %v458 = vld [vmem:[%s272 + $0xd0] sm:$0xff]
      %v459 = vld [vmem:[%s272 + $0xd8] sm:$0xff]
      %v460 = vld [vmem:[%s272 + $0xe0] sm:$0xff]
      %v461 = vld [vmem:[%s272 + $0xe8] sm:$0xff]
      %v462 = vld [vmem:[%s272 + $0xf0] sm:$0xff]
      %v463 = vld [vmem:[%s272 + $0xf8] sm:$0xff]
      %v464 = vld [vmem:[%s272 + $0x100] sm:$0xff]
      %v465 = vld [vmem:[%s272 + $0x108] sm:$0xff]
      %v466 = vld [vmem:[%s272 + $0x110] sm:$0xff]
      %v467 = vld [vmem:[%s272 + $0x118] sm:$0xff]
      %v468 = vld [vmem:[%s272 + $0x120] sm:$0xff]
      %v469 = vld [vmem:[%s272 + $0x128] sm:$0xff]
      %v470 = vld [vmem:[%s272 + $0x130] sm:$0xff]
      %v471 = vld [vmem:[%s272 + $0x138] sm:$0xff]
      %v472 = vld [vmem:[%s272 + $0x140] sm:$0xff]
      %v473 = vld [vmem:[%s272 + $0x148] sm:$0xff]
      %v474 = vld [vmem:[%s272 + $0x150] sm:$0xff]
      %v475 = vld [vmem:[%s272 + $0x158] sm:$0xff]
      %v476 = vld [vmem:[%s272 + $0x160] sm:$0xff]
      %v477 = vld [vmem:[%s272 + $0x168] sm:$0xff]
      %v478 = vld [vmem:[%s272 + $0x170] sm:$0xff]
      %v479 = vld [vmem:[%s272 + $0x178] sm:$0xff]
      %v480 = vld [vmem:[%s272 + $0x180] sm:$0xff]
      %v481 = vld [vmem:[%s272 + $0x188] sm:$0xff]
      %v482 = vld [vmem:[%s272 + $0x190] sm:$0xff]
      %v483 = vld [vmem:[%s272 + $0x198] sm:$0xff]
      %v484 = vld [vmem:[%s272 + $0x1a0] sm:$0xff]
      %v485 = vld [vmem:[%s272 + $0x1a8] sm:$0xff]
      %v486 = vld [vmem:[%s272 + $0x1b0] sm:$0xff]
      %v487 = vld [vmem:[%s272 + $0x1b8] sm:$0xff]
      %v488 = vld [vmem:[%s272 + $0x1c0] sm:$0xff]
      %v489 = vld [vmem:[%s272 + $0x1c8] sm:$0xff]
      %v490 = vld [vmem:[%s272 + $0x1d0] sm:$0xff]
      %v491 = vld [vmem:[%s272 + $0x1d8] sm:$0xff]
      %v492 = vld [vmem:[%s272 + $0x1e0] sm:$0xff]
      %v493 = vld [vmem:[%s272 + $0x1e8] sm:$0xff]
      %v494 = vld [vmem:[%s272 + $0x1f0] sm:$0xff]
      %v495 = vld [vmem:[%s272 + $0x1f8] sm:$0xff]
      %497 = vset.pattern.permute.xlu0 0
      %498 = vperm.xlu0 %497, %v432
      %v499 = vpop.permute.xlu0 %498
      %502 = vset.pattern.permute.xlu0 0
      %503 = vperm.xlu0 %502, %v433
      %v504 = vpop.permute.xlu0 %503
      %507 = vset.pattern.permute.xlu0 0
      %508 = vperm.xlu0 %507, %v434
      %v509 = vpop.permute.xlu0 %508
      %512 = vset.pattern.permute.xlu0 0
      %513 = vperm.xlu0 %512, %v435
      %v514 = vpop.permute.xlu0 %513
      %517 = vset.pattern.permute.xlu0 0
      %518 = vperm.xlu0 %517, %v436
      %v519 = vpop.permute.xlu0 %518
      %522 = vset.pattern.permute.xlu0 0
      %523 = vperm.xlu0 %522, %v437
      %v524 = vpop.permute.xlu0 %523
      %527 = vset.pattern.permute.xlu0 0
      %528 = vperm.xlu0 %527, %v438
      %v529 = vpop.permute.xlu0 %528
      %532 = vset.pattern.permute.xlu0 0
      %533 = vperm.xlu0 %532, %v439
      %v534 = vpop.permute.xlu0 %533
      %537 = vset.pattern.permute.xlu0 0
      %538 = vperm.xlu0 %537, %v440
      %v539 = vpop.permute.xlu0 %538
      %542 = vset.pattern.permute.xlu0 0
      %543 = vperm.xlu0 %542, %v441
      %v544 = vpop.permute.xlu0 %543
      %547 = vset.pattern.permute.xlu0 0
      %548 = vperm.xlu0 %547, %v442
      %v549 = vpop.permute.xlu0 %548
      %552 = vset.pattern.permute.xlu0 0
      %553 = vperm.xlu0 %552, %v443
      %v554 = vpop.permute.xlu0 %553
      %557 = vset.pattern.permute.xlu0 0
      %558 = vperm.xlu0 %557, %v444
      %v559 = vpop.permute.xlu0 %558
      %562 = vset.pattern.permute.xlu0 0
      %563 = vperm.xlu0 %562, %v445
      %v564 = vpop.permute.xlu0 %563
      %567 = vset.pattern.permute.xlu0 0
      %568 = vperm.xlu0 %567, %v446
      %v569 = vpop.permute.xlu0 %568
      %572 = vset.pattern.permute.xlu0 0
      %573 = vperm.xlu0 %572, %v447
      %v574 = vpop.permute.xlu0 %573
      %577 = vset.pattern.permute.xlu0 0
      %578 = vperm.xlu0 %577, %v448
      %v579 = vpop.permute.xlu0 %578
      %582 = vset.pattern.permute.xlu0 0
      %583 = vperm.xlu0 %582, %v449
      %v584 = vpop.permute.xlu0 %583
      %587 = vset.pattern.permute.xlu0 0
      %588 = vperm.xlu0 %587, %v450
      %v589 = vpop.permute.xlu0 %588
      %592 = vset.pattern.permute.xlu0 0
      %593 = vperm.xlu0 %592, %v451
      %v594 = vpop.permute.xlu0 %593
      %597 = vset.pattern.permute.xlu0 0
      %598 = vperm.xlu0 %597, %v452
      %v599 = vpop.permute.xlu0 %598
      %602 = vset.pattern.permute.xlu0 0
      %603 = vperm.xlu0 %602, %v453
      %v604 = vpop.permute.xlu0 %603
      %607 = vset.pattern.permute.xlu0 0
      %608 = vperm.xlu0 %607, %v454
      %v609 = vpop.permute.xlu0 %608
      %612 = vset.pattern.permute.xlu0 0
      %613 = vperm.xlu0 %612, %v455
      %v614 = vpop.permute.xlu0 %613
      %617 = vset.pattern.permute.xlu0 0
      %618 = vperm.xlu0 %617, %v456
      %v619 = vpop.permute.xlu0 %618
      %622 = vset.pattern.permute.xlu0 0
      %623 = vperm.xlu0 %622, %v457
      %v624 = vpop.permute.xlu0 %623
      %627 = vset.pattern.permute.xlu0 0
      %628 = vperm.xlu0 %627, %v458
      %v629 = vpop.permute.xlu0 %628
      %632 = vset.pattern.permute.xlu0 0
      %633 = vperm.xlu0 %632, %v459
      %v634 = vpop.permute.xlu0 %633
      %637 = vset.pattern.permute.xlu0 0
      %638 = vperm.xlu0 %637, %v460
      %v639 = vpop.permute.xlu0 %638
      %642 = vset.pattern.permute.xlu0 0
      %643 = vperm.xlu0 %642, %v461
      %v644 = vpop.permute.xlu0 %643
      %647 = vset.pattern.permute.xlu0 0
      %648 = vperm.xlu0 %647, %v462
      %v649 = vpop.permute.xlu0 %648
      %652 = vset.pattern.permute.xlu0 0
      %653 = vperm.xlu0 %652, %v463
      %v654 = vpop.permute.xlu0 %653
      %657 = vset.pattern.permute.xlu0 0
      %658 = vperm.xlu0 %657, %v464
      %v659 = vpop.permute.xlu0 %658
      %662 = vset.pattern.permute.xlu0 0
      %663 = vperm.xlu0 %662, %v465
      %v664 = vpop.permute.xlu0 %663
      %667 = vset.pattern.permute.xlu0 0
      %668 = vperm.xlu0 %667, %v466
      %v669 = vpop.permute.xlu0 %668
      %672 = vset.pattern.permute.xlu0 0
      %673 = vperm.xlu0 %672, %v467
      %v674 = vpop.permute.xlu0 %673
      %677 = vset.pattern.permute.xlu0 0
      %678 = vperm.xlu0 %677, %v468
      %v679 = vpop.permute.xlu0 %678
      %682 = vset.pattern.permute.xlu0 0
      %683 = vperm.xlu0 %682, %v469
      %v684 = vpop.permute.xlu0 %683
      %687 = vset.pattern.permute.xlu0 0
      %688 = vperm.xlu0 %687, %v470
      %v689 = vpop.permute.xlu0 %688
      %692 = vset.pattern.permute.xlu0 0
      %693 = vperm.xlu0 %692, %v471
      %v694 = vpop.permute.xlu0 %693
      %697 = vset.pattern.permute.xlu0 0
      %698 = vperm.xlu0 %697, %v472
      %v699 = vpop.permute.xlu0 %698
      %702 = vset.pattern.permute.xlu0 0
      %703 = vperm.xlu0 %702, %v473
      %v704 = vpop.permute.xlu0 %703
      %707 = vset.pattern.permute.xlu0 0
      %708 = vperm.xlu0 %707, %v474
      %v709 = vpop.permute.xlu0 %708
      %712 = vset.pattern.permute.xlu0 0
      %713 = vperm.xlu0 %712, %v475
      %v714 = vpop.permute.xlu0 %713
      %717 = vset.pattern.permute.xlu0 0
      %718 = vperm.xlu0 %717, %v476
      %v719 = vpop.permute.xlu0 %718
      %722 = vset.pattern.permute.xlu0 0
      %723 = vperm.xlu0 %722, %v477
      %v724 = vpop.permute.xlu0 %723
      %727 = vset.pattern.permute.xlu0 0
      %728 = vperm.xlu0 %727, %v478
      %v729 = vpop.permute.xlu0 %728
      %732 = vset.pattern.permute.xlu0 0
      %733 = vperm.xlu0 %732, %v479
      %v734 = vpop.permute.xlu0 %733
      %737 = vset.pattern.permute.xlu0 0
      %738 = vperm.xlu0 %737, %v480
      %v739 = vpop.permute.xlu0 %738
      %742 = vset.pattern.permute.xlu0 0
      %743 = vperm.xlu0 %742, %v481
      %v744 = vpop.permute.xlu0 %743
      %747 = vset.pattern.permute.xlu0 0
      %748 = vperm.xlu0 %747, %v482
      %v749 = vpop.permute.xlu0 %748
      %752 = vset.pattern.permute.xlu0 0
      %753 = vperm.xlu0 %752, %v483
      %v754 = vpop.permute.xlu0 %753
      %757 = vset.pattern.permute.xlu0 0
      %758 = vperm.xlu0 %757, %v484
      %v759 = vpop.permute.xlu0 %758
      %762 = vset.pattern.permute.xlu0 0
      %763 = vperm.xlu0 %762, %v485
      %v764 = vpop.permute.xlu0 %763
      %767 = vset.pattern.permute.xlu0 0
      %768 = vperm.xlu0 %767, %v486
      %v769 = vpop.permute.xlu0 %768
      %772 = vset.pattern.permute.xlu0 0
      %773 = vperm.xlu0 %772, %v487
      %v774 = vpop.permute.xlu0 %773
      %777 = vset.pattern.permute.xlu0 0
      %778 = vperm.xlu0 %777, %v488
      %v779 = vpop.permute.xlu0 %778
      %782 = vset.pattern.permute.xlu0 0
      %783 = vperm.xlu0 %782, %v489
      %v784 = vpop.permute.xlu0 %783
      %787 = vset.pattern.permute.xlu0 0
      %788 = vperm.xlu0 %787, %v490
      %v789 = vpop.permute.xlu0 %788
      %792 = vset.pattern.permute.xlu0 0
      %793 = vperm.xlu0 %792, %v491
      %v794 = vpop.permute.xlu0 %793
      %797 = vset.pattern.permute.xlu0 0
      %798 = vperm.xlu0 %797, %v492
      %v799 = vpop.permute.xlu0 %798
      %802 = vset.pattern.permute.xlu0 0
      %803 = vperm.xlu0 %802, %v493
      %v804 = vpop.permute.xlu0 %803
      %807 = vset.pattern.permute.xlu0 0
      %808 = vperm.xlu0 %807, %v494
      %v809 = vpop.permute.xlu0 %808
      %812 = vset.pattern.permute.xlu0 0
      %813 = vperm.xlu0 %812, %v495
      %v814 = vpop.permute.xlu0 %813
      %v816 = vmul.f32 %v368, %v499
      %v817 = vmul.f32 %v369, %v504
      %v818 = vmul.f32 %v370, %v509
      %v819 = vmul.f32 %v371, %v514
      %v820 = vmul.f32 %v372, %v519
      %v821 = vmul.f32 %v373, %v524
      %v822 = vmul.f32 %v374, %v529
      %v823 = vmul.f32 %v375, %v534
      %v824 = vmul.f32 %v376, %v539
      %v825 = vmul.f32 %v377, %v544
      %v826 = vmul.f32 %v378, %v549
      %v827 = vmul.f32 %v379, %v554
      %v828 = vmul.f32 %v380, %v559
      %v829 = vmul.f32 %v381, %v564
      %v830 = vmul.f32 %v382, %v569
      %v831 = vmul.f32 %v383, %v574
      %v832 = vmul.f32 %v384, %v579
      %v833 = vmul.f32 %v385, %v584
      %v834 = vmul.f32 %v386, %v589
      %v835 = vmul.f32 %v387, %v594
      %v836 = vmul.f32 %v388, %v599
      %v837 = vmul.f32 %v389, %v604
      %v838 = vmul.f32 %v390, %v609
      %v839 = vmul.f32 %v391, %v614
      %v840 = vmul.f32 %v392, %v619
      %v841 = vmul.f32 %v393, %v624
      %v842 = vmul.f32 %v394, %v629
      %v843 = vmul.f32 %v395, %v634
      %v844 = vmul.f32 %v396, %v639
      %v845 = vmul.f32 %v397, %v644
      %v846 = vmul.f32 %v398, %v649
      %v847 = vmul.f32 %v399, %v654
      %v848 = vmul.f32 %v400, %v659
      %v849 = vmul.f32 %v401, %v664
      %v850 = vmul.f32 %v402, %v669
      %v851 = vmul.f32 %v403, %v674
      %v852 = vmul.f32 %v404, %v679
      %v853 = vmul.f32 %v405, %v684
      %v854 = vmul.f32 %v406, %v689
      %v855 = vmul.f32 %v407, %v694
      %v856 = vmul.f32 %v408, %v699
      %v857 = vmul.f32 %v409, %v704
      %v858 = vmul.f32 %v410, %v709
      %v859 = vmul.f32 %v411, %v714
      %v860 = vmul.f32 %v412, %v719
      %v861 = vmul.f32 %v413, %v724
      %v862 = vmul.f32 %v414, %v729
      %v863 = vmul.f32 %v415, %v734
      %v864 = vmul.f32 %v416, %v739
      %v865 = vmul.f32 %v417, %v744
      %v866 = vmul.f32 %v418, %v749
      %v867 = vmul.f32 %v419, %v754
      %v868 = vmul.f32 %v420, %v759
      %v869 = vmul.f32 %v421, %v764
      %v870 = vmul.f32 %v422, %v769
      %v871 = vmul.f32 %v423, %v774
      %v872 = vmul.f32 %v424, %v779
      %v873 = vmul.f32 %v425, %v784
      %v874 = vmul.f32 %v426, %v789
      %v875 = vmul.f32 %v427, %v794
      %v876 = vmul.f32 %v428, %v799
      %v877 = vmul.f32 %v429, %v804
      %v878 = vmul.f32 %v430, %v809
      %v879 = vmul.f32 %v431, %v814
      %v880 = vpack.c.bf16 %v817, %v816
      %v881 = vpack.c.bf16 %v819, %v818
      %v882 = vpack.c.bf16 %v821, %v820
      %v883 = vpack.c.bf16 %v823, %v822
      %v884 = vpack.c.bf16 %v825, %v824
      %v885 = vpack.c.bf16 %v827, %v826
      %v886 = vpack.c.bf16 %v829, %v828
      %v887 = vpack.c.bf16 %v831, %v830
      %v888 = vpack.c.bf16 %v833, %v832
      %v889 = vpack.c.bf16 %v835, %v834
      %v890 = vpack.c.bf16 %v837, %v836
      %v891 = vpack.c.bf16 %v839, %v838
      %v892 = vpack.c.bf16 %v841, %v840
      %v893 = vpack.c.bf16 %v843, %v842
      %v894 = vpack.c.bf16 %v845, %v844
      %v895 = vpack.c.bf16 %v847, %v846
      %v896 = vpack.c.bf16 %v849, %v848
      %v897 = vpack.c.bf16 %v851, %v850
      %v898 = vpack.c.bf16 %v853, %v852
      %v899 = vpack.c.bf16 %v855, %v854
      %v900 = vpack.c.bf16 %v857, %v856
      %v901 = vpack.c.bf16 %v859, %v858
      %v902 = vpack.c.bf16 %v861, %v860
      %v903 = vpack.c.bf16 %v863, %v862
      %v904 = vpack.c.bf16 %v865, %v864
      %v905 = vpack.c.bf16 %v867, %v866
      %v906 = vpack.c.bf16 %v869, %v868
      %v907 = vpack.c.bf16 %v871, %v870
      %v908 = vpack.c.bf16 %v873, %v872
      %v909 = vpack.c.bf16 %v875, %v874
      %v910 = vpack.c.bf16 %v877, %v876
      %v911 = vpack.c.bf16 %v879, %v878
      %s912 = smul.u32 %s35, 512
      %s913 = scalar_lea.vmem %s3, %s912
      %v914 = vld [vmem:[%s913] sm:$0xff]
      %v915 = vld [vmem:[%s913 + $0x8] sm:$0xff]
      %v916 = vld [vmem:[%s913 + $0x10] sm:$0xff]
      %v917 = vld [vmem:[%s913 + $0x18] sm:$0xff]
      %v918 = vld [vmem:[%s913 + $0x20] sm:$0xff]
      %v919 = vld [vmem:[%s913 + $0x28] sm:$0xff]
      %v920 = vld [vmem:[%s913 + $0x30] sm:$0xff]
      %v921 = vld [vmem:[%s913 + $0x38] sm:$0xff]
      %v922 = vld [vmem:[%s913 + $0x40] sm:$0xff]
      %v923 = vld [vmem:[%s913 + $0x48] sm:$0xff]
      %v924 = vld [vmem:[%s913 + $0x50] sm:$0xff]
      %v925 = vld [vmem:[%s913 + $0x58] sm:$0xff]
      %v926 = vld [vmem:[%s913 + $0x60] sm:$0xff]
      %v927 = vld [vmem:[%s913 + $0x68] sm:$0xff]
      %v928 = vld [vmem:[%s913 + $0x70] sm:$0xff]
      %v929 = vld [vmem:[%s913 + $0x78] sm:$0xff]
      %v930 = vld [vmem:[%s913 + $0x80] sm:$0xff]
      %v931 = vld [vmem:[%s913 + $0x88] sm:$0xff]
      %v932 = vld [vmem:[%s913 + $0x90] sm:$0xff]
      %v933 = vld [vmem:[%s913 + $0x98] sm:$0xff]
      %v934 = vld [vmem:[%s913 + $0xa0] sm:$0xff]
      %v935 = vld [vmem:[%s913 + $0xa8] sm:$0xff]
      %v936 = vld [vmem:[%s913 + $0xb0] sm:$0xff]
      %v937 = vld [vmem:[%s913 + $0xb8] sm:$0xff]
      %v938 = vld [vmem:[%s913 + $0xc0] sm:$0xff]
      %v939 = vld [vmem:[%s913 + $0xc8] sm:$0xff]
      %v940 = vld [vmem:[%s913 + $0xd0] sm:$0xff]
      %v941 = vld [vmem:[%s913 + $0xd8] sm:$0xff]
      %v942 = vld [vmem:[%s913 + $0xe0] sm:$0xff]
      %v943 = vld [vmem:[%s913 + $0xe8] sm:$0xff]
      %v944 = vld [vmem:[%s913 + $0xf0] sm:$0xff]
      %v945 = vld [vmem:[%s913 + $0xf8] sm:$0xff]
      %v946 = vld [vmem:[%s913 + $0x100] sm:$0xff]
      %v947 = vld [vmem:[%s913 + $0x108] sm:$0xff]
      %v948 = vld [vmem:[%s913 + $0x110] sm:$0xff]
      %v949 = vld [vmem:[%s913 + $0x118] sm:$0xff]
      %v950 = vld [vmem:[%s913 + $0x120] sm:$0xff]
      %v951 = vld [vmem:[%s913 + $0x128] sm:$0xff]
      %v952 = vld [vmem:[%s913 + $0x130] sm:$0xff]
      %v953 = vld [vmem:[%s913 + $0x138] sm:$0xff]
      %v954 = vld [vmem:[%s913 + $0x140] sm:$0xff]
      %v955 = vld [vmem:[%s913 + $0x148] sm:$0xff]
      %v956 = vld [vmem:[%s913 + $0x150] sm:$0xff]
      %v957 = vld [vmem:[%s913 + $0x158] sm:$0xff]
      %v958 = vld [vmem:[%s913 + $0x160] sm:$0xff]
      %v959 = vld [vmem:[%s913 + $0x168] sm:$0xff]
      %v960 = vld [vmem:[%s913 + $0x170] sm:$0xff]
      %v961 = vld [vmem:[%s913 + $0x178] sm:$0xff]
      %v962 = vld [vmem:[%s913 + $0x180] sm:$0xff]
      %v963 = vld [vmem:[%s913 + $0x188] sm:$0xff]
      %v964 = vld [vmem:[%s913 + $0x190] sm:$0xff]
      %v965 = vld [vmem:[%s913 + $0x198] sm:$0xff]
      %v966 = vld [vmem:[%s913 + $0x1a0] sm:$0xff]
      %v967 = vld [vmem:[%s913 + $0x1a8] sm:$0xff]
      %v968 = vld [vmem:[%s913 + $0x1b0] sm:$0xff]
      %v969 = vld [vmem:[%s913 + $0x1b8] sm:$0xff]
      %v970 = vld [vmem:[%s913 + $0x1c0] sm:$0xff]
      %v971 = vld [vmem:[%s913 + $0x1c8] sm:$0xff]
      %v972 = vld [vmem:[%s913 + $0x1d0] sm:$0xff]
      %v973 = vld [vmem:[%s913 + $0x1d8] sm:$0xff]
      %v974 = vld [vmem:[%s913 + $0x1e0] sm:$0xff]
      %v975 = vld [vmem:[%s913 + $0x1e8] sm:$0xff]
      %v976 = vld [vmem:[%s913 + $0x1f0] sm:$0xff]
      %v977 = vld [vmem:[%s913 + $0x1f8] sm:$0xff]
      %v978 = vpack.c.bf16 %v915, %v914
      %v979 = vpack.c.bf16 %v917, %v916
      %v980 = vpack.c.bf16 %v919, %v918
      %v981 = vpack.c.bf16 %v921, %v920
      %v982 = vpack.c.bf16 %v923, %v922
      %v983 = vpack.c.bf16 %v925, %v924
      %v984 = vpack.c.bf16 %v927, %v926
      %v985 = vpack.c.bf16 %v929, %v928
      %v986 = vpack.c.bf16 %v931, %v930
      %v987 = vpack.c.bf16 %v933, %v932
      %v988 = vpack.c.bf16 %v935, %v934
      %v989 = vpack.c.bf16 %v937, %v936
      %v990 = vpack.c.bf16 %v939, %v938
      %v991 = vpack.c.bf16 %v941, %v940
      %v992 = vpack.c.bf16 %v943, %v942
      %v993 = vpack.c.bf16 %v945, %v944
      %v994 = vpack.c.bf16 %v947, %v946
      %v995 = vpack.c.bf16 %v949, %v948
      %v996 = vpack.c.bf16 %v951, %v950
      %v997 = vpack.c.bf16 %v953, %v952
      %v998 = vpack.c.bf16 %v955, %v954
      %v999 = vpack.c.bf16 %v957, %v956
      %v1000 = vpack.c.bf16 %v959, %v958
      %v1001 = vpack.c.bf16 %v961, %v960
      %v1002 = vpack.c.bf16 %v963, %v962
      %v1003 = vpack.c.bf16 %v965, %v964
      %v1004 = vpack.c.bf16 %v967, %v966
      %v1005 = vpack.c.bf16 %v969, %v968
      %v1006 = vpack.c.bf16 %v971, %v970
      %v1007 = vpack.c.bf16 %v973, %v972
      %v1008 = vpack.c.bf16 %v975, %v974
      %v1009 = vpack.c.bf16 %v977, %v976
      %v1010 = vld [vmem:[%s5] sm:$0xf]
      %v1011 = vld [vmem:[%s5 + $0x4] sm:$0xf]
      %v1012 = vld [vmem:[%s5 + $0x8] sm:$0xf]
      %v1013 = vld [vmem:[%s5 + $0xc] sm:$0xf]
      %v1014 = vld [vmem:[%s5 + $0x10] sm:$0xf]
      %v1015 = vld [vmem:[%s5 + $0x14] sm:$0xf]
      %v1016 = vld [vmem:[%s5 + $0x18] sm:$0xf]
      %v1017 = vld [vmem:[%s5 + $0x1c] sm:$0xf]
      %v1018 = vld [vmem:[%s5 + $0x20] sm:$0xf]
      %v1019 = vld [vmem:[%s5 + $0x24] sm:$0xf]
      %v1020 = vld [vmem:[%s5 + $0x28] sm:$0xf]
      %v1021 = vld [vmem:[%s5 + $0x2c] sm:$0xf]
      %v1022 = vld [vmem:[%s5 + $0x30] sm:$0xf]
      %v1023 = vld [vmem:[%s5 + $0x34] sm:$0xf]
      %v1024 = vld [vmem:[%s5 + $0x38] sm:$0xf]
      %v1025 = vld [vmem:[%s5 + $0x3c] sm:$0xf]
      %v1026 = vld [vmem:[%s5 + $0x40] sm:$0xf]
      %v1027 = vld [vmem:[%s5 + $0x44] sm:$0xf]
      %v1028 = vld [vmem:[%s5 + $0x48] sm:$0xf]
      %v1029 = vld [vmem:[%s5 + $0x4c] sm:$0xf]
      %v1030 = vld [vmem:[%s5 + $0x50] sm:$0xf]
      %v1031 = vld [vmem:[%s5 + $0x54] sm:$0xf]
      %v1032 = vld [vmem:[%s5 + $0x58] sm:$0xf]
      %v1033 = vld [vmem:[%s5 + $0x5c] sm:$0xf]
      %v1034 = vld [vmem:[%s5 + $0x60] sm:$0xf]
      %v1035 = vld [vmem:[%s5 + $0x64] sm:$0xf]
      %v1036 = vld [vmem:[%s5 + $0x68] sm:$0xf]
      %v1037 = vld [vmem:[%s5 + $0x6c] sm:$0xf]
      %v1038 = vld [vmem:[%s5 + $0x70] sm:$0xf]
      %v1039 = vld [vmem:[%s5 + $0x74] sm:$0xf]
      %v1040 = vld [vmem:[%s5 + $0x78] sm:$0xf]
      %v1041 = vld [vmem:[%s5 + $0x7c] sm:$0xf]
      %v1042 = vld [vmem:[%s6] sm:$0x1]
      %v1044 = vlaneseq
      %v1045 = vshrl.u32 %v1044, 7
      %v1046 = vsub.s32 0, %v1045
      %v1047 = vrot.slane %v1042, %v1046
      %v1081 = vunpack.c.l.b16 %v1010
      %v1082 = vunpack.c.l.b16 %v1011
      %v1083 = vunpack.c.l.b16 %v1012
      %v1084 = vunpack.c.l.b16 %v1013
      %v1085 = vunpack.c.l.b16 %v1014
      %v1086 = vunpack.c.l.b16 %v1015
      %v1087 = vunpack.c.l.b16 %v1016
      %v1088 = vunpack.c.l.b16 %v1017
      %v1089 = vunpack.c.l.b16 %v1018
      %v1090 = vunpack.c.l.b16 %v1019
      %v1091 = vunpack.c.l.b16 %v1020
      %v1092 = vunpack.c.l.b16 %v1021
      %v1093 = vunpack.c.l.b16 %v1022
      %v1094 = vunpack.c.l.b16 %v1023
      %v1095 = vunpack.c.l.b16 %v1024
      %v1096 = vunpack.c.l.b16 %v1025
      %v1097 = vunpack.c.l.b16 %v1026
      %v1098 = vunpack.c.l.b16 %v1027
      %v1099 = vunpack.c.l.b16 %v1028
      %v1100 = vunpack.c.l.b16 %v1029
      %v1101 = vunpack.c.l.b16 %v1030
      %v1102 = vunpack.c.l.b16 %v1031
      %v1103 = vunpack.c.l.b16 %v1032
      %v1104 = vunpack.c.l.b16 %v1033
      %v1105 = vunpack.c.l.b16 %v1034
      %v1106 = vunpack.c.l.b16 %v1035
      %v1107 = vunpack.c.l.b16 %v1036
      %v1108 = vunpack.c.l.b16 %v1037
      %v1109 = vunpack.c.l.b16 %v1038
      %v1110 = vunpack.c.l.b16 %v1039
      %v1111 = vunpack.c.l.b16 %v1040
      %v1112 = vunpack.c.l.b16 %v1041
      %v1113 = vpack.c.b16 %v1082, %v1081
      %v1114 = vpack.c.b16 %v1084, %v1083
      %v1115 = vpack.c.b16 %v1086, %v1085
      %v1116 = vpack.c.b16 %v1088, %v1087
      %v1117 = vpack.c.b16 %v1090, %v1089
      %v1118 = vpack.c.b16 %v1092, %v1091
      %v1119 = vpack.c.b16 %v1094, %v1093
      %v1120 = vpack.c.b16 %v1096, %v1095
      %v1121 = vpack.c.b16 %v1098, %v1097
      %v1122 = vpack.c.b16 %v1100, %v1099
      %v1123 = vpack.c.b16 %v1102, %v1101
      %v1124 = vpack.c.b16 %v1104, %v1103
      %v1125 = vpack.c.b16 %v1106, %v1105
      %v1126 = vpack.c.b16 %v1108, %v1107
      %v1127 = vpack.c.b16 %v1110, %v1109
      %v1128 = vpack.c.b16 %v1112, %v1111
      %1145 = vmatprep.subr.bf16.mxu0 0
      %1146 = vmatpush1.bf16.msra.mxu0 %v1120
      %1147 = vmatprep.subr.bf16.mxu0 0
      %1148 = vmatpush1.bf16.msra.mxu0 %v1119
      %1149 = vmatprep.subr.bf16.mxu0 0
      %1150 = vmatpush1.bf16.msra.mxu0 %v1118
      %1151 = vmatprep.subr.bf16.mxu0 0
      %1152 = vmatpush1.bf16.msra.mxu0 %v1117
      %1153 = vmatprep.subr.bf16.mxu0 0
      %1154 = vmatpush1.bf16.msra.mxu0 %v1116
      %1155 = vmatprep.subr.bf16.mxu0 0
      %1156 = vmatpush1.bf16.msra.mxu0 %v1115
      %1157 = vmatprep.subr.bf16.mxu0 0
      %1158 = vmatpush1.bf16.msra.mxu0 %v1114
      %1159 = vmatprep.subr.bf16.mxu0 0
      %1160 = vmatpush1.bf16.msra.mxu0 %v1113
      %1161 = vmatprep.subr.bf16.mxu0 0
      %1162 = vmatpush2.bf16.msra.mxu0 %v1128
      %1163 = vmatprep.subr.bf16.mxu0 0
      %1164 = vmatpush2.bf16.msra.mxu0 %v1127
      %1165 = vmatprep.subr.bf16.mxu0 0
      %1166 = vmatpush2.bf16.msra.mxu0 %v1126
      %1167 = vmatprep.subr.bf16.mxu0 0
      %1168 = vmatpush2.bf16.msra.mxu0 %v1125
      %1169 = vmatprep.subr.bf16.mxu0 0
      %1170 = vmatpush2.bf16.msra.mxu0 %v1124
      %1171 = vmatprep.subr.bf16.mxu0 0
      %1172 = vmatpush2.bf16.msra.mxu0 %v1123
      %1173 = vmatprep.subr.bf16.mxu0 0
      %1174 = vmatpush2.bf16.msra.mxu0 %v1122
      %1175 = vmatprep.subr.bf16.mxu0 0
      %1176 = vmatpush2.bf16.msra.mxu0 %v1121
      %1177 = vmatprep.mubr.bf16.mxu0 %v978
      %1178 = vmatmul.mubr.bf16.gmra.mxu0 %v880
      %v1179 = vpop.f32.mrf.mxu0
      %v1180 = vadd.f32 %v1047, %v1179
      %v1181 = vpop.f32.mrf.mxu0
      %v1182 = vpop.f32.mrf.mxu0
      %v1183 = vadd.f32 %v1047, %v1182
      %v1184 = vpop.f32.mrf.mxu0
      %1185 = vmatprep.mubr.bf16.mxu0 %v979
      %1186 = vmatmul.mubr.bf16.gmra.mxu0 %v881
      %v1187 = vpop.f32.mrf.mxu0
      %v1188 = vadd.f32 %v1047, %v1187
      %v1189 = vpop.f32.mrf.mxu0
      %v1190 = vpop.f32.mrf.mxu0
      %v1191 = vadd.f32 %v1047, %v1190
      %v1192 = vpop.f32.mrf.mxu0
      %1193 = vmatprep.mubr.bf16.mxu0 %v980
      %1194 = vmatmul.mubr.bf16.gmra.mxu0 %v882
      %v1195 = vpop.f32.mrf.mxu0
      %v1196 = vadd.f32 %v1047, %v1195
      %v1197 = vpop.f32.mrf.mxu0
      %v1198 = vpop.f32.mrf.mxu0
      %v1199 = vadd.f32 %v1047, %v1198
      %v1200 = vpop.f32.mrf.mxu0
      %1201 = vmatprep.mubr.bf16.mxu0 %v981
      %1202 = vmatmul.mubr.bf16.gmra.mxu0 %v883
      %v1203 = vpop.f32.mrf.mxu0
      %v1204 = vadd.f32 %v1047, %v1203
      %v1205 = vpop.f32.mrf.mxu0
      %v1206 = vpop.f32.mrf.mxu0
      %v1207 = vadd.f32 %v1047, %v1206
      %v1208 = vpop.f32.mrf.mxu0
      %1209 = vmatprep.mubr.bf16.mxu0 %v982
      %1210 = vmatmul.mubr.bf16.gmra.mxu0 %v884
      %v1211 = vpop.f32.mrf.mxu0
      %v1212 = vadd.f32 %v1047, %v1211
      %v1213 = vpop.f32.mrf.mxu0
      %v1214 = vpop.f32.mrf.mxu0
      %v1215 = vadd.f32 %v1047, %v1214
      %v1216 = vpop.f32.mrf.mxu0
      %1217 = vmatprep.mubr.bf16.mxu0 %v983
      %1218 = vmatmul.mubr.bf16.gmra.mxu0 %v885
      %v1219 = vpop.f32.mrf.mxu0
      %v1220 = vadd.f32 %v1047, %v1219
      %v1221 = vpop.f32.mrf.mxu0
      %v1222 = vpop.f32.mrf.mxu0
      %v1223 = vadd.f32 %v1047, %v1222
      %v1224 = vpop.f32.mrf.mxu0
      %1225 = vmatprep.mubr.bf16.mxu0 %v984
      %1226 = vmatmul.mubr.bf16.gmra.mxu0 %v886
      %v1227 = vpop.f32.mrf.mxu0
      %v1228 = vadd.f32 %v1047, %v1227
      %v1229 = vpop.f32.mrf.mxu0
      %v1230 = vpop.f32.mrf.mxu0
      %v1231 = vadd.f32 %v1047, %v1230
      %v1232 = vpop.f32.mrf.mxu0
      %1233 = vmatprep.mubr.bf16.mxu0 %v985
      %1234 = vmatmul.mubr.bf16.gmra.mxu0 %v887
      %v1235 = vpop.f32.mrf.mxu0
      %v1236 = vadd.f32 %v1047, %v1235
      %v1237 = vpop.f32.mrf.mxu0
      %v1238 = vpop.f32.mrf.mxu0
      %v1239 = vadd.f32 %v1047, %v1238
      %v1240 = vpop.f32.mrf.mxu0
      %1241 = vmatprep.mubr.bf16.mxu0 %v986
      %1242 = vmatmul.mubr.bf16.gmra.mxu0 %v888
      %v1243 = vpop.f32.mrf.mxu0
      %v1244 = vadd.f32 %v1047, %v1243
      %v1245 = vpop.f32.mrf.mxu0
      %v1246 = vpop.f32.mrf.mxu0
      %v1247 = vadd.f32 %v1047, %v1246
      %v1248 = vpop.f32.mrf.mxu0
      %1249 = vmatprep.mubr.bf16.mxu0 %v987
      %1250 = vmatmul.mubr.bf16.gmra.mxu0 %v889
      %v1251 = vpop.f32.mrf.mxu0
      %v1252 = vadd.f32 %v1047, %v1251
      %v1253 = vpop.f32.mrf.mxu0
      %v1254 = vpop.f32.mrf.mxu0
      %v1255 = vadd.f32 %v1047, %v1254
      %v1256 = vpop.f32.mrf.mxu0
      %1257 = vmatprep.mubr.bf16.mxu0 %v988
      %1258 = vmatmul.mubr.bf16.gmra.mxu0 %v890
      %v1259 = vpop.f32.mrf.mxu0
      %v1260 = vadd.f32 %v1047, %v1259
      %v1261 = vpop.f32.mrf.mxu0
      %v1262 = vpop.f32.mrf.mxu0
      %v1263 = vadd.f32 %v1047, %v1262
      %v1264 = vpop.f32.mrf.mxu0
      %1265 = vmatprep.mubr.bf16.mxu0 %v989
      %1266 = vmatmul.mubr.bf16.gmra.mxu0 %v891
      %v1267 = vpop.f32.mrf.mxu0
      %v1268 = vadd.f32 %v1047, %v1267
      %v1269 = vpop.f32.mrf.mxu0
      %v1270 = vpop.f32.mrf.mxu0
      %v1271 = vadd.f32 %v1047, %v1270
      %v1272 = vpop.f32.mrf.mxu0
      %1273 = vmatprep.mubr.bf16.mxu0 %v990
      %1274 = vmatmul.mubr.bf16.gmra.mxu0 %v892
      %v1275 = vpop.f32.mrf.mxu0
      %v1276 = vadd.f32 %v1047, %v1275
      %v1277 = vpop.f32.mrf.mxu0
      %v1278 = vpop.f32.mrf.mxu0
      %v1279 = vadd.f32 %v1047, %v1278
      %v1280 = vpop.f32.mrf.mxu0
      %1281 = vmatprep.mubr.bf16.mxu0 %v991
      %1282 = vmatmul.mubr.bf16.gmra.mxu0 %v893
      %v1283 = vpop.f32.mrf.mxu0
      %v1284 = vadd.f32 %v1047, %v1283
      %v1285 = vpop.f32.mrf.mxu0
      %v1286 = vpop.f32.mrf.mxu0
      %v1287 = vadd.f32 %v1047, %v1286
      %v1288 = vpop.f32.mrf.mxu0
      %1289 = vmatprep.mubr.bf16.mxu0 %v992
      %1290 = vmatmul.mubr.bf16.gmra.mxu0 %v894
      %v1291 = vpop.f32.mrf.mxu0
      %v1292 = vadd.f32 %v1047, %v1291
      %v1293 = vpop.f32.mrf.mxu0
      %v1294 = vpop.f32.mrf.mxu0
      %v1295 = vadd.f32 %v1047, %v1294
      %v1296 = vpop.f32.mrf.mxu0
      %1297 = vmatprep.mubr.bf16.mxu0 %v993
      %1298 = vmatmul.mubr.bf16.gmra.mxu0 %v895
      %v1299 = vpop.f32.mrf.mxu0
      %v1300 = vadd.f32 %v1047, %v1299
      %v1301 = vpop.f32.mrf.mxu0
      %v1302 = vpop.f32.mrf.mxu0
      %v1303 = vadd.f32 %v1047, %v1302
      %v1304 = vpop.f32.mrf.mxu0
      %1305 = vmatprep.mubr.bf16.mxu0 %v994
      %1306 = vmatmul.mubr.bf16.gmra.mxu0 %v896
      %v1307 = vpop.f32.mrf.mxu0
      %v1308 = vadd.f32 %v1047, %v1307
      %v1309 = vpop.f32.mrf.mxu0
      %v1310 = vpop.f32.mrf.mxu0
      %v1311 = vadd.f32 %v1047, %v1310
      %v1312 = vpop.f32.mrf.mxu0
      %1313 = vmatprep.mubr.bf16.mxu0 %v995
      %1314 = vmatmul.mubr.bf16.gmra.mxu0 %v897
      %v1315 = vpop.f32.mrf.mxu0
      %v1316 = vadd.f32 %v1047, %v1315
      %v1317 = vpop.f32.mrf.mxu0
      %v1318 = vpop.f32.mrf.mxu0
      %v1319 = vadd.f32 %v1047, %v1318
      %v1320 = vpop.f32.mrf.mxu0
      %1321 = vmatprep.mubr.bf16.mxu0 %v996
      %1322 = vmatmul.mubr.bf16.gmra.mxu0 %v898
      %v1323 = vpop.f32.mrf.mxu0
      %v1324 = vadd.f32 %v1047, %v1323
      %v1325 = vpop.f32.mrf.mxu0
      %v1326 = vpop.f32.mrf.mxu0
      %v1327 = vadd.f32 %v1047, %v1326
      %v1328 = vpop.f32.mrf.mxu0
      %1329 = vmatprep.mubr.bf16.mxu0 %v997
      %1330 = vmatmul.mubr.bf16.gmra.mxu0 %v899
      %v1331 = vpop.f32.mrf.mxu0
      %v1332 = vadd.f32 %v1047, %v1331
      %v1333 = vpop.f32.mrf.mxu0
      %v1334 = vpop.f32.mrf.mxu0
      %v1335 = vadd.f32 %v1047, %v1334
      %v1336 = vpop.f32.mrf.mxu0
      %1337 = vmatprep.mubr.bf16.mxu0 %v998
      %1338 = vmatmul.mubr.bf16.gmra.mxu0 %v900
      %v1339 = vpop.f32.mrf.mxu0
      %v1340 = vadd.f32 %v1047, %v1339
      %v1341 = vpop.f32.mrf.mxu0
      %v1342 = vpop.f32.mrf.mxu0
      %v1343 = vadd.f32 %v1047, %v1342
      %v1344 = vpop.f32.mrf.mxu0
      %1345 = vmatprep.mubr.bf16.mxu0 %v999
      %1346 = vmatmul.mubr.bf16.gmra.mxu0 %v901
      %v1347 = vpop.f32.mrf.mxu0
      %v1348 = vadd.f32 %v1047, %v1347
      %v1349 = vpop.f32.mrf.mxu0
      %v1350 = vpop.f32.mrf.mxu0
      %v1351 = vadd.f32 %v1047, %v1350
      %v1352 = vpop.f32.mrf.mxu0
      %1353 = vmatprep.mubr.bf16.mxu0 %v1000
      %1354 = vmatmul.mubr.bf16.gmra.mxu0 %v902
      %v1355 = vpop.f32.mrf.mxu0
      %v1356 = vadd.f32 %v1047, %v1355
      %v1357 = vpop.f32.mrf.mxu0
      %v1358 = vpop.f32.mrf.mxu0
      %v1359 = vadd.f32 %v1047, %v1358
      %v1360 = vpop.f32.mrf.mxu0
      %1361 = vmatprep.mubr.bf16.mxu0 %v1001
      %1362 = vmatmul.mubr.bf16.gmra.mxu0 %v903
      %v1363 = vpop.f32.mrf.mxu0
      %v1364 = vadd.f32 %v1047, %v1363
      %v1365 = vpop.f32.mrf.mxu0
      %v1366 = vpop.f32.mrf.mxu0
      %v1367 = vadd.f32 %v1047, %v1366
      %v1368 = vpop.f32.mrf.mxu0
      %1369 = vmatprep.mubr.bf16.mxu0 %v1002
      %1370 = vmatmul.mubr.bf16.gmra.mxu0 %v904
      %v1371 = vpop.f32.mrf.mxu0
      %v1372 = vadd.f32 %v1047, %v1371
      %v1373 = vpop.f32.mrf.mxu0
      %v1374 = vpop.f32.mrf.mxu0
      %v1375 = vadd.f32 %v1047, %v1374
      %v1376 = vpop.f32.mrf.mxu0
      %1377 = vmatprep.mubr.bf16.mxu0 %v1003
      %1378 = vmatmul.mubr.bf16.gmra.mxu0 %v905
      %v1379 = vpop.f32.mrf.mxu0
      %v1380 = vadd.f32 %v1047, %v1379
      %v1381 = vpop.f32.mrf.mxu0
      %v1382 = vpop.f32.mrf.mxu0
      %v1383 = vadd.f32 %v1047, %v1382
      %v1384 = vpop.f32.mrf.mxu0
      %1385 = vmatprep.mubr.bf16.mxu0 %v1004
      %1386 = vmatmul.mubr.bf16.gmra.mxu0 %v906
      %v1387 = vpop.f32.mrf.mxu0
      %v1388 = vadd.f32 %v1047, %v1387
      %v1389 = vpop.f32.mrf.mxu0
      %v1390 = vpop.f32.mrf.mxu0
      %v1391 = vadd.f32 %v1047, %v1390
      %v1392 = vpop.f32.mrf.mxu0
      %1393 = vmatprep.mubr.bf16.mxu0 %v1005
      %1394 = vmatmul.mubr.bf16.gmra.mxu0 %v907
      %v1395 = vpop.f32.mrf.mxu0
      %v1396 = vadd.f32 %v1047, %v1395
      %v1397 = vpop.f32.mrf.mxu0
      %v1398 = vpop.f32.mrf.mxu0
      %v1399 = vadd.f32 %v1047, %v1398
      %v1400 = vpop.f32.mrf.mxu0
      %1401 = vmatprep.mubr.bf16.mxu0 %v1006
      %1402 = vmatmul.mubr.bf16.gmra.mxu0 %v908
      %v1403 = vpop.f32.mrf.mxu0
      %v1404 = vadd.f32 %v1047, %v1403
      %v1405 = vpop.f32.mrf.mxu0
      %v1406 = vpop.f32.mrf.mxu0
      %v1407 = vadd.f32 %v1047, %v1406
      %v1408 = vpop.f32.mrf.mxu0
      %1409 = vmatprep.mubr.bf16.mxu0 %v1007
      %1410 = vmatmul.mubr.bf16.gmra.mxu0 %v909
      %v1411 = vpop.f32.mrf.mxu0
      %v1412 = vadd.f32 %v1047, %v1411
      %v1413 = vpop.f32.mrf.mxu0
      %v1414 = vpop.f32.mrf.mxu0
      %v1415 = vadd.f32 %v1047, %v1414
      %v1416 = vpop.f32.mrf.mxu0
      %1417 = vmatprep.mubr.bf16.mxu0 %v1008
      %1418 = vmatmul.mubr.bf16.gmra.mxu0 %v910
      %v1419 = vpop.f32.mrf.mxu0
      %v1420 = vadd.f32 %v1047, %v1419
      %v1421 = vpop.f32.mrf.mxu0
      %v1422 = vpop.f32.mrf.mxu0
      %v1423 = vadd.f32 %v1047, %v1422
      %v1424 = vpop.f32.mrf.mxu0
      %1425 = vmatprep.mubr.bf16.mxu0 %v1009
      %1426 = vmatmul.mubr.bf16.gmra.mxu0 %v911
      %v1427 = vpop.f32.mrf.mxu0
      %v1428 = vadd.f32 %v1047, %v1427
      %v1429 = vpop.f32.mrf.mxu0
      %v1430 = vpop.f32.mrf.mxu0
      %v1431 = vadd.f32 %v1047, %v1430
      %v1432 = vpop.f32.mrf.mxu0
      %1433 = vdwg.mxu0
      %v1434 = vmax.f32 %v1180, 0.0
      %v1435 = vmax.f32 %v1183, 0.0
      %v1436 = vmax.f32 %v1188, 0.0
      %v1437 = vmax.f32 %v1191, 0.0
      %v1438 = vmax.f32 %v1196, 0.0
      %v1439 = vmax.f32 %v1199, 0.0
      %v1440 = vmax.f32 %v1204, 0.0
      %v1441 = vmax.f32 %v1207, 0.0
      %v1442 = vmax.f32 %v1212, 0.0
      %v1443 = vmax.f32 %v1215, 0.0
      %v1444 = vmax.f32 %v1220, 0.0
      %v1445 = vmax.f32 %v1223, 0.0
      %v1446 = vmax.f32 %v1228, 0.0
      %v1447 = vmax.f32 %v1231, 0.0
      %v1448 = vmax.f32 %v1236, 0.0
      %v1449 = vmax.f32 %v1239, 0.0
      %v1450 = vmax.f32 %v1244, 0.0
      %v1451 = vmax.f32 %v1247, 0.0
      %v1452 = vmax.f32 %v1252, 0.0
      %v1453 = vmax.f32 %v1255, 0.0
      %v1454 = vmax.f32 %v1260, 0.0
      %v1455 = vmax.f32 %v1263, 0.0
      %v1456 = vmax.f32 %v1268, 0.0
      %v1457 = vmax.f32 %v1271, 0.0
      %v1458 = vmax.f32 %v1276, 0.0
      %v1459 = vmax.f32 %v1279, 0.0
      %v1460 = vmax.f32 %v1284, 0.0
      %v1461 = vmax.f32 %v1287, 0.0
      %v1462 = vmax.f32 %v1292, 0.0
      %v1463 = vmax.f32 %v1295, 0.0
      %v1464 = vmax.f32 %v1300, 0.0
      %v1465 = vmax.f32 %v1303, 0.0
      %v1466 = vmax.f32 %v1308, 0.0
      %v1467 = vmax.f32 %v1311, 0.0
      %v1468 = vmax.f32 %v1316, 0.0
      %v1469 = vmax.f32 %v1319, 0.0
      %v1470 = vmax.f32 %v1324, 0.0
      %v1471 = vmax.f32 %v1327, 0.0
      %v1472 = vmax.f32 %v1332, 0.0
      %v1473 = vmax.f32 %v1335, 0.0
      %v1474 = vmax.f32 %v1340, 0.0
      %v1475 = vmax.f32 %v1343, 0.0
      %v1476 = vmax.f32 %v1348, 0.0
      %v1477 = vmax.f32 %v1351, 0.0
      %v1478 = vmax.f32 %v1356, 0.0
      %v1479 = vmax.f32 %v1359, 0.0
      %v1480 = vmax.f32 %v1364, 0.0
      %v1481 = vmax.f32 %v1367, 0.0
      %v1482 = vmax.f32 %v1372, 0.0
      %v1483 = vmax.f32 %v1375, 0.0
      %v1484 = vmax.f32 %v1380, 0.0
      %v1485 = vmax.f32 %v1383, 0.0
      %v1486 = vmax.f32 %v1388, 0.0
      %v1487 = vmax.f32 %v1391, 0.0
      %v1488 = vmax.f32 %v1396, 0.0
      %v1489 = vmax.f32 %v1399, 0.0
      %v1490 = vmax.f32 %v1404, 0.0
      %v1491 = vmax.f32 %v1407, 0.0
      %v1492 = vmax.f32 %v1412, 0.0
      %v1493 = vmax.f32 %v1415, 0.0
      %v1494 = vmax.f32 %v1420, 0.0
      %v1495 = vmax.f32 %v1423, 0.0
      %v1496 = vmax.f32 %v1428, 0.0
      %v1497 = vmax.f32 %v1431, 0.0
      %v1498 = vpack.c.bf16 %v1435, %v1434
      %v1499 = vpack.c.bf16 %v1437, %v1436
      %v1500 = vpack.c.bf16 %v1439, %v1438
      %v1501 = vpack.c.bf16 %v1441, %v1440
      %v1502 = vpack.c.bf16 %v1443, %v1442
      %v1503 = vpack.c.bf16 %v1445, %v1444
      %v1504 = vpack.c.bf16 %v1447, %v1446
      %v1505 = vpack.c.bf16 %v1449, %v1448
      %v1506 = vpack.c.bf16 %v1451, %v1450
      %v1507 = vpack.c.bf16 %v1453, %v1452
      %v1508 = vpack.c.bf16 %v1455, %v1454
      %v1509 = vpack.c.bf16 %v1457, %v1456
      %v1510 = vpack.c.bf16 %v1459, %v1458
      %v1511 = vpack.c.bf16 %v1461, %v1460
      %v1512 = vpack.c.bf16 %v1463, %v1462
      %v1513 = vpack.c.bf16 %v1465, %v1464
      %v1514 = vpack.c.bf16 %v1467, %v1466
      %v1515 = vpack.c.bf16 %v1469, %v1468
      %v1516 = vpack.c.bf16 %v1471, %v1470
      %v1517 = vpack.c.bf16 %v1473, %v1472
      %v1518 = vpack.c.bf16 %v1475, %v1474
      %v1519 = vpack.c.bf16 %v1477, %v1476
      %v1520 = vpack.c.bf16 %v1479, %v1478
      %v1521 = vpack.c.bf16 %v1481, %v1480
      %v1522 = vpack.c.bf16 %v1483, %v1482
      %v1523 = vpack.c.bf16 %v1485, %v1484
      %v1524 = vpack.c.bf16 %v1487, %v1486
      %v1525 = vpack.c.bf16 %v1489, %v1488
      %v1526 = vpack.c.bf16 %v1491, %v1490
      %v1527 = vpack.c.bf16 %v1493, %v1492
      %v1528 = vpack.c.bf16 %v1495, %v1494
      %v1529 = vpack.c.bf16 %v1497, %v1496
      %v1562 = vunpack.c.l.b16 %v1498
      %v1563 = vunpack.c.h.b16 %v1498
      %v1564 = vunpack.c.l.b16 %v1499
      %v1565 = vunpack.c.h.b16 %v1499
      %v1566 = vunpack.c.l.b16 %v1500
      %v1567 = vunpack.c.h.b16 %v1500
      %v1568 = vunpack.c.l.b16 %v1501
      %v1569 = vunpack.c.h.b16 %v1501
      %v1570 = vunpack.c.l.b16 %v1502
      %v1571 = vunpack.c.h.b16 %v1502
      %v1572 = vunpack.c.l.b16 %v1503
      %v1573 = vunpack.c.h.b16 %v1503
      %v1574 = vunpack.c.l.b16 %v1504
      %v1575 = vunpack.c.h.b16 %v1504
      %v1576 = vunpack.c.l.b16 %v1505
      %v1577 = vunpack.c.h.b16 %v1505
      %v1578 = vunpack.c.l.b16 %v1506
      %v1579 = vunpack.c.h.b16 %v1506
      %v1580 = vunpack.c.l.b16 %v1507
      %v1581 = vunpack.c.h.b16 %v1507
      %v1582 = vunpack.c.l.b16 %v1508
      %v1583 = vunpack.c.h.b16 %v1508
      %v1584 = vunpack.c.l.b16 %v1509
      %v1585 = vunpack.c.h.b16 %v1509
      %v1586 = vunpack.c.l.b16 %v1510
      %v1587 = vunpack.c.h.b16 %v1510
      %v1588 = vunpack.c.l.b16 %v1511
      %v1589 = vunpack.c.h.b16 %v1511
      %v1590 = vunpack.c.l.b16 %v1512
      %v1591 = vunpack.c.h.b16 %v1512
      %v1592 = vunpack.c.l.b16 %v1513
      %v1593 = vunpack.c.h.b16 %v1513
      %v1594 = vunpack.c.l.b16 %v1514
      %v1595 = vunpack.c.h.b16 %v1514
      %v1596 = vunpack.c.l.b16 %v1515
      %v1597 = vunpack.c.h.b16 %v1515
      %v1598 = vunpack.c.l.b16 %v1516
      %v1599 = vunpack.c.h.b16 %v1516
      %v1600 = vunpack.c.l.b16 %v1517
      %v1601 = vunpack.c.h.b16 %v1517
      %v1602 = vunpack.c.l.b16 %v1518
      %v1603 = vunpack.c.h.b16 %v1518
      %v1604 = vunpack.c.l.b16 %v1519
      %v1605 = vunpack.c.h.b16 %v1519
      %v1606 = vunpack.c.l.b16 %v1520
      %v1607 = vunpack.c.h.b16 %v1520
      %v1608 = vunpack.c.l.b16 %v1521
      %v1609 = vunpack.c.h.b16 %v1521
      %v1610 = vunpack.c.l.b16 %v1522
      %v1611 = vunpack.c.h.b16 %v1522
      %v1612 = vunpack.c.l.b16 %v1523
      %v1613 = vunpack.c.h.b16 %v1523
      %v1614 = vunpack.c.l.b16 %v1524
      %v1615 = vunpack.c.h.b16 %v1524
      %v1616 = vunpack.c.l.b16 %v1525
      %v1617 = vunpack.c.h.b16 %v1525
      %v1618 = vunpack.c.l.b16 %v1526
      %v1619 = vunpack.c.h.b16 %v1526
      %v1620 = vunpack.c.l.b16 %v1527
      %v1621 = vunpack.c.h.b16 %v1527
      %v1622 = vunpack.c.l.b16 %v1528
      %v1623 = vunpack.c.h.b16 %v1528
      %v1624 = vunpack.c.l.b16 %v1529
      %v1625 = vunpack.c.h.b16 %v1529
      %v1626 = vpack.c.b16 %v1562, %v1562
      %v1627 = vpack.c.b16 %v1563, %v1563
      %v1628 = vpack.c.b16 %v1564, %v1564
      %v1629 = vpack.c.b16 %v1565, %v1565
      %v1630 = vpack.c.b16 %v1566, %v1566
      %v1631 = vpack.c.b16 %v1567, %v1567
      %v1632 = vpack.c.b16 %v1568, %v1568
      %v1633 = vpack.c.b16 %v1569, %v1569
      %v1634 = vpack.c.b16 %v1570, %v1570
      %v1635 = vpack.c.b16 %v1571, %v1571
      %v1636 = vpack.c.b16 %v1572, %v1572
      %v1637 = vpack.c.b16 %v1573, %v1573
      %v1638 = vpack.c.b16 %v1574, %v1574
      %v1639 = vpack.c.b16 %v1575, %v1575
      %v1640 = vpack.c.b16 %v1576, %v1576
      %v1641 = vpack.c.b16 %v1577, %v1577
      %v1642 = vpack.c.b16 %v1578, %v1578
      %v1643 = vpack.c.b16 %v1579, %v1579
      %v1644 = vpack.c.b16 %v1580, %v1580
      %v1645 = vpack.c.b16 %v1581, %v1581
      %v1646 = vpack.c.b16 %v1582, %v1582
      %v1647 = vpack.c.b16 %v1583, %v1583
      %v1648 = vpack.c.b16 %v1584, %v1584
      %v1649 = vpack.c.b16 %v1585, %v1585
      %v1650 = vpack.c.b16 %v1586, %v1586
      %v1651 = vpack.c.b16 %v1587, %v1587
      %v1652 = vpack.c.b16 %v1588, %v1588
      %v1653 = vpack.c.b16 %v1589, %v1589
      %v1654 = vpack.c.b16 %v1590, %v1590
      %v1655 = vpack.c.b16 %v1591, %v1591
      %v1656 = vpack.c.b16 %v1592, %v1592
      %v1657 = vpack.c.b16 %v1593, %v1593
      %v1658 = vpack.c.b16 %v1594, %v1594
      %v1659 = vpack.c.b16 %v1595, %v1595
      %v1660 = vpack.c.b16 %v1596, %v1596
      %v1661 = vpack.c.b16 %v1597, %v1597
      %v1662 = vpack.c.b16 %v1598, %v1598
      %v1663 = vpack.c.b16 %v1599, %v1599
      %v1664 = vpack.c.b16 %v1600, %v1600
      %v1665 = vpack.c.b16 %v1601, %v1601
      %v1666 = vpack.c.b16 %v1602, %v1602
      %v1667 = vpack.c.b16 %v1603, %v1603
      %v1668 = vpack.c.b16 %v1604, %v1604
      %v1669 = vpack.c.b16 %v1605, %v1605
      %v1670 = vpack.c.b16 %v1606, %v1606
      %v1671 = vpack.c.b16 %v1607, %v1607
      %v1672 = vpack.c.b16 %v1608, %v1608
      %v1673 = vpack.c.b16 %v1609, %v1609
      %v1674 = vpack.c.b16 %v1610, %v1610
      %v1675 = vpack.c.b16 %v1611, %v1611
      %v1676 = vpack.c.b16 %v1612, %v1612
      %v1677 = vpack.c.b16 %v1613, %v1613
      %v1678 = vpack.c.b16 %v1614, %v1614
      %v1679 = vpack.c.b16 %v1615, %v1615
      %v1680 = vpack.c.b16 %v1616, %v1616
      %v1681 = vpack.c.b16 %v1617, %v1617
      %v1682 = vpack.c.b16 %v1618, %v1618
      %v1683 = vpack.c.b16 %v1619, %v1619
      %v1684 = vpack.c.b16 %v1620, %v1620
      %v1685 = vpack.c.b16 %v1621, %v1621
      %v1686 = vpack.c.b16 %v1622, %v1622
      %v1687 = vpack.c.b16 %v1623, %v1623
      %v1688 = vpack.c.b16 %v1624, %v1624
      %v1689 = vpack.c.b16 %v1625, %v1625
      %1754 = vst [vmem:[%s278] sm:$0xf] %v1626
      %1755 = vst [vmem:[%s278 + $0x4] sm:$0xf] %v1627
      %1756 = vst [vmem:[%s278 + $0x8] sm:$0xf] %v1628
      %1757 = vst [vmem:[%s278 + $0xc] sm:$0xf] %v1629
      %1758 = vst [vmem:[%s278 + $0x10] sm:$0xf] %v1630
      %1759 = vst [vmem:[%s278 + $0x14] sm:$0xf] %v1631
      %1760 = vst [vmem:[%s278 + $0x18] sm:$0xf] %v1632
      %1761 = vst [vmem:[%s278 + $0x1c] sm:$0xf] %v1633
      %1762 = vst [vmem:[%s278 + $0x20] sm:$0xf] %v1634
      %1763 = vst [vmem:[%s278 + $0x24] sm:$0xf] %v1635
      %1764 = vst [vmem:[%s278 + $0x28] sm:$0xf] %v1636
      %1765 = vst [vmem:[%s278 + $0x2c] sm:$0xf] %v1637
      %1766 = vst [vmem:[%s278 + $0x30] sm:$0xf] %v1638
      %1767 = vst [vmem:[%s278 + $0x34] sm:$0xf] %v1639
      %1768 = vst [vmem:[%s278 + $0x38] sm:$0xf] %v1640
      %1769 = vst [vmem:[%s278 + $0x3c] sm:$0xf] %v1641
      %1770 = vst [vmem:[%s278 + $0x40] sm:$0xf] %v1642
      %1771 = vst [vmem:[%s278 + $0x44] sm:$0xf] %v1643
      %1772 = vst [vmem:[%s278 + $0x48] sm:$0xf] %v1644
      %1773 = vst [vmem:[%s278 + $0x4c] sm:$0xf] %v1645
      %1774 = vst [vmem:[%s278 + $0x50] sm:$0xf] %v1646
      %1775 = vst [vmem:[%s278 + $0x54] sm:$0xf] %v1647
      %1776 = vst [vmem:[%s278 + $0x58] sm:$0xf] %v1648
      %1777 = vst [vmem:[%s278 + $0x5c] sm:$0xf] %v1649
      %1778 = vst [vmem:[%s278 + $0x60] sm:$0xf] %v1650
      %1779 = vst [vmem:[%s278 + $0x64] sm:$0xf] %v1651
      %1780 = vst [vmem:[%s278 + $0x68] sm:$0xf] %v1652
      %1781 = vst [vmem:[%s278 + $0x6c] sm:$0xf] %v1653
      %1782 = vst [vmem:[%s278 + $0x70] sm:$0xf] %v1654
      %1783 = vst [vmem:[%s278 + $0x74] sm:$0xf] %v1655
      %1784 = vst [vmem:[%s278 + $0x78] sm:$0xf] %v1656
      %1785 = vst [vmem:[%s278 + $0x7c] sm:$0xf] %v1657
      %1786 = vst [vmem:[%s278 + $0x80] sm:$0xf] %v1658
      %1787 = vst [vmem:[%s278 + $0x84] sm:$0xf] %v1659
      %1788 = vst [vmem:[%s278 + $0x88] sm:$0xf] %v1660
      %1789 = vst [vmem:[%s278 + $0x8c] sm:$0xf] %v1661
      %1790 = vst [vmem:[%s278 + $0x90] sm:$0xf] %v1662
      %1791 = vst [vmem:[%s278 + $0x94] sm:$0xf] %v1663
      %1792 = vst [vmem:[%s278 + $0x98] sm:$0xf] %v1664
      %1793 = vst [vmem:[%s278 + $0x9c] sm:$0xf] %v1665
      %1794 = vst [vmem:[%s278 + $0xa0] sm:$0xf] %v1666
      %1795 = vst [vmem:[%s278 + $0xa4] sm:$0xf] %v1667
      %1796 = vst [vmem:[%s278 + $0xa8] sm:$0xf] %v1668
      %1797 = vst [vmem:[%s278 + $0xac] sm:$0xf] %v1669
      %1798 = vst [vmem:[%s278 + $0xb0] sm:$0xf] %v1670
      %1799 = vst [vmem:[%s278 + $0xb4] sm:$0xf] %v1671
      %1800 = vst [vmem:[%s278 + $0xb8] sm:$0xf] %v1672
      %1801 = vst [vmem:[%s278 + $0xbc] sm:$0xf] %v1673
      %1802 = vst [vmem:[%s278 + $0xc0] sm:$0xf] %v1674
      %1803 = vst [vmem:[%s278 + $0xc4] sm:$0xf] %v1675
      %1804 = vst [vmem:[%s278 + $0xc8] sm:$0xf] %v1676
      %1805 = vst [vmem:[%s278 + $0xcc] sm:$0xf] %v1677
      %1806 = vst [vmem:[%s278 + $0xd0] sm:$0xf] %v1678
      %1807 = vst [vmem:[%s278 + $0xd4] sm:$0xf] %v1679
      %1808 = vst [vmem:[%s278 + $0xd8] sm:$0xf] %v1680
      %1809 = vst [vmem:[%s278 + $0xdc] sm:$0xf] %v1681
      %1810 = vst [vmem:[%s278 + $0xe0] sm:$0xf] %v1682
      %1811 = vst [vmem:[%s278 + $0xe4] sm:$0xf] %v1683
      %1812 = vst [vmem:[%s278 + $0xe8] sm:$0xf] %v1684
      %1813 = vst [vmem:[%s278 + $0xec] sm:$0xf] %v1685
      %1814 = vst [vmem:[%s278 + $0xf0] sm:$0xf] %v1686
      %1815 = vst [vmem:[%s278 + $0xf4] sm:$0xf] %v1687
      %1816 = vst [vmem:[%s278 + $0xf8] sm:$0xf] %v1688
      %1817 = vst [vmem:[%s278 + $0xfc] sm:$0xf] %v1689
      %v1818 = vld [vmem:[%s7] sm:$0x1]
      %v1820 = vlaneseq
      %v1821 = vshrl.u32 %v1820, 7
      %v1822 = vsub.s32 0, %v1821
      %v1823 = vrot.slane %v1818, %v1822
      %v1825 = vmul.f32 %v1434, %v1823
      %v1826 = vmul.f32 %v1435, %v1823
      %v1827 = vmul.f32 %v1436, %v1823
      %v1828 = vmul.f32 %v1437, %v1823
      %v1829 = vmul.f32 %v1438, %v1823
      %v1830 = vmul.f32 %v1439, %v1823
      %v1831 = vmul.f32 %v1440, %v1823
      %v1832 = vmul.f32 %v1441, %v1823
      %v1833 = vmul.f32 %v1442, %v1823
      %v1834 = vmul.f32 %v1443, %v1823
      %v1835 = vmul.f32 %v1444, %v1823
      %v1836 = vmul.f32 %v1445, %v1823
      %v1837 = vmul.f32 %v1446, %v1823
      %v1838 = vmul.f32 %v1447, %v1823
      %v1839 = vmul.f32 %v1448, %v1823
      %v1840 = vmul.f32 %v1449, %v1823
      %v1841 = vmul.f32 %v1450, %v1823
      %v1842 = vmul.f32 %v1451, %v1823
      %v1843 = vmul.f32 %v1452, %v1823
      %v1844 = vmul.f32 %v1453, %v1823
      %v1845 = vmul.f32 %v1454, %v1823
      %v1846 = vmul.f32 %v1455, %v1823
      %v1847 = vmul.f32 %v1456, %v1823
      %v1848 = vmul.f32 %v1457, %v1823
      %v1849 = vmul.f32 %v1458, %v1823
      %v1850 = vmul.f32 %v1459, %v1823
      %v1851 = vmul.f32 %v1460, %v1823
      %v1852 = vmul.f32 %v1461, %v1823
      %v1853 = vmul.f32 %v1462, %v1823
      %v1854 = vmul.f32 %v1463, %v1823
      %v1855 = vmul.f32 %v1464, %v1823
      %v1856 = vmul.f32 %v1465, %v1823
      %v1857 = vmul.f32 %v1466, %v1823
      %v1858 = vmul.f32 %v1467, %v1823
      %v1859 = vmul.f32 %v1468, %v1823
      %v1860 = vmul.f32 %v1469, %v1823
      %v1861 = vmul.f32 %v1470, %v1823
      %v1862 = vmul.f32 %v1471, %v1823
      %v1863 = vmul.f32 %v1472, %v1823
      %v1864 = vmul.f32 %v1473, %v1823
      %v1865 = vmul.f32 %v1474, %v1823
      %v1866 = vmul.f32 %v1475, %v1823
      %v1867 = vmul.f32 %v1476, %v1823
      %v1868 = vmul.f32 %v1477, %v1823
      %v1869 = vmul.f32 %v1478, %v1823
      %v1870 = vmul.f32 %v1479, %v1823
      %v1871 = vmul.f32 %v1480, %v1823
      %v1872 = vmul.f32 %v1481, %v1823
      %v1873 = vmul.f32 %v1482, %v1823
      %v1874 = vmul.f32 %v1483, %v1823
      %v1875 = vmul.f32 %v1484, %v1823
      %v1876 = vmul.f32 %v1485, %v1823
      %v1877 = vmul.f32 %v1486, %v1823
      %v1878 = vmul.f32 %v1487, %v1823
      %v1879 = vmul.f32 %v1488, %v1823
      %v1880 = vmul.f32 %v1489, %v1823
      %v1881 = vmul.f32 %v1490, %v1823
      %v1882 = vmul.f32 %v1491, %v1823
      %v1883 = vmul.f32 %v1492, %v1823
      %v1884 = vmul.f32 %v1493, %v1823
      %v1885 = vmul.f32 %v1494, %v1823
      %v1886 = vmul.f32 %v1495, %v1823
      %v1887 = vmul.f32 %v1496, %v1823
      %v1888 = vmul.f32 %v1497, %v1823
      %1889 = vadd.xlane.f32.xlu0 %v1825
      %v1890 = vpop.xlane.xlu0 %1889
      %1891 = vadd.xlane.f32.xlu0 %v1826
      %v1892 = vpop.xlane.xlu0 %1891
      %1893 = vadd.xlane.f32.xlu0 %v1827
      %v1894 = vpop.xlane.xlu0 %1893
      %1895 = vadd.xlane.f32.xlu0 %v1828
      %v1896 = vpop.xlane.xlu0 %1895
      %1897 = vadd.xlane.f32.xlu0 %v1829
      %v1898 = vpop.xlane.xlu0 %1897
      %1899 = vadd.xlane.f32.xlu0 %v1830
      %v1900 = vpop.xlane.xlu0 %1899
      %1901 = vadd.xlane.f32.xlu0 %v1831
      %v1902 = vpop.xlane.xlu0 %1901
      %1903 = vadd.xlane.f32.xlu0 %v1832
      %v1904 = vpop.xlane.xlu0 %1903
      %1905 = vadd.xlane.f32.xlu0 %v1833
      %v1906 = vpop.xlane.xlu0 %1905
      %1907 = vadd.xlane.f32.xlu0 %v1834
      %v1908 = vpop.xlane.xlu0 %1907
      %1909 = vadd.xlane.f32.xlu0 %v1835
      %v1910 = vpop.xlane.xlu0 %1909
      %1911 = vadd.xlane.f32.xlu0 %v1836
      %v1912 = vpop.xlane.xlu0 %1911
      %1913 = vadd.xlane.f32.xlu0 %v1837
      %v1914 = vpop.xlane.xlu0 %1913
      %1915 = vadd.xlane.f32.xlu0 %v1838
      %v1916 = vpop.xlane.xlu0 %1915
      %1917 = vadd.xlane.f32.xlu0 %v1839
      %v1918 = vpop.xlane.xlu0 %1917
      %1919 = vadd.xlane.f32.xlu0 %v1840
      %v1920 = vpop.xlane.xlu0 %1919
      %1921 = vadd.xlane.f32.xlu0 %v1841
      %v1922 = vpop.xlane.xlu0 %1921
      %1923 = vadd.xlane.f32.xlu0 %v1842
      %v1924 = vpop.xlane.xlu0 %1923
      %1925 = vadd.xlane.f32.xlu0 %v1843
      %v1926 = vpop.xlane.xlu0 %1925
      %1927 = vadd.xlane.f32.xlu0 %v1844
      %v1928 = vpop.xlane.xlu0 %1927
      %1929 = vadd.xlane.f32.xlu0 %v1845
      %v1930 = vpop.xlane.xlu0 %1929
      %1931 = vadd.xlane.f32.xlu0 %v1846
      %v1932 = vpop.xlane.xlu0 %1931
      %1933 = vadd.xlane.f32.xlu0 %v1847
      %v1934 = vpop.xlane.xlu0 %1933
      %1935 = vadd.xlane.f32.xlu0 %v1848
      %v1936 = vpop.xlane.xlu0 %1935
      %1937 = vadd.xlane.f32.xlu0 %v1849
      %v1938 = vpop.xlane.xlu0 %1937
      %1939 = vadd.xlane.f32.xlu0 %v1850
      %v1940 = vpop.xlane.xlu0 %1939
      %1941 = vadd.xlane.f32.xlu0 %v1851
      %v1942 = vpop.xlane.xlu0 %1941
      %1943 = vadd.xlane.f32.xlu0 %v1852
      %v1944 = vpop.xlane.xlu0 %1943
      %1945 = vadd.xlane.f32.xlu0 %v1853
      %v1946 = vpop.xlane.xlu0 %1945
      %1947 = vadd.xlane.f32.xlu0 %v1854
      %v1948 = vpop.xlane.xlu0 %1947
      %1949 = vadd.xlane.f32.xlu0 %v1855
      %v1950 = vpop.xlane.xlu0 %1949
      %1951 = vadd.xlane.f32.xlu0 %v1856
      %v1952 = vpop.xlane.xlu0 %1951
      %1953 = vadd.xlane.f32.xlu0 %v1857
      %v1954 = vpop.xlane.xlu0 %1953
      %1955 = vadd.xlane.f32.xlu0 %v1858
      %v1956 = vpop.xlane.xlu0 %1955
      %1957 = vadd.xlane.f32.xlu0 %v1859
      %v1958 = vpop.xlane.xlu0 %1957
      %1959 = vadd.xlane.f32.xlu0 %v1860
      %v1960 = vpop.xlane.xlu0 %1959
      %1961 = vadd.xlane.f32.xlu0 %v1861
      %v1962 = vpop.xlane.xlu0 %1961
      %1963 = vadd.xlane.f32.xlu0 %v1862
      %v1964 = vpop.xlane.xlu0 %1963
      %1965 = vadd.xlane.f32.xlu0 %v1863
      %v1966 = vpop.xlane.xlu0 %1965
      %1967 = vadd.xlane.f32.xlu0 %v1864
      %v1968 = vpop.xlane.xlu0 %1967
      %1969 = vadd.xlane.f32.xlu0 %v1865
      %v1970 = vpop.xlane.xlu0 %1969
      %1971 = vadd.xlane.f32.xlu0 %v1866
      %v1972 = vpop.xlane.xlu0 %1971
      %1973 = vadd.xlane.f32.xlu0 %v1867
      %v1974 = vpop.xlane.xlu0 %1973
      %1975 = vadd.xlane.f32.xlu0 %v1868
      %v1976 = vpop.xlane.xlu0 %1975
      %1977 = vadd.xlane.f32.xlu0 %v1869
      %v1978 = vpop.xlane.xlu0 %1977
      %1979 = vadd.xlane.f32.xlu0 %v1870
      %v1980 = vpop.xlane.xlu0 %1979
      %1981 = vadd.xlane.f32.xlu0 %v1871
      %v1982 = vpop.xlane.xlu0 %1981
      %1983 = vadd.xlane.f32.xlu0 %v1872
      %v1984 = vpop.xlane.xlu0 %1983
      %1985 = vadd.xlane.f32.xlu0 %v1873
      %v1986 = vpop.xlane.xlu0 %1985
      %1987 = vadd.xlane.f32.xlu0 %v1874
      %v1988 = vpop.xlane.xlu0 %1987
      %1989 = vadd.xlane.f32.xlu0 %v1875
      %v1990 = vpop.xlane.xlu0 %1989
      %1991 = vadd.xlane.f32.xlu0 %v1876
      %v1992 = vpop.xlane.xlu0 %1991
      %1993 = vadd.xlane.f32.xlu0 %v1877
      %v1994 = vpop.xlane.xlu0 %1993
      %1995 = vadd.xlane.f32.xlu0 %v1878
      %v1996 = vpop.xlane.xlu0 %1995
      %1997 = vadd.xlane.f32.xlu0 %v1879
      %v1998 = vpop.xlane.xlu0 %1997
      %1999 = vadd.xlane.f32.xlu0 %v1880
      %v2000 = vpop.xlane.xlu0 %1999
      %2001 = vadd.xlane.f32.xlu0 %v1881
      %v2002 = vpop.xlane.xlu0 %2001
      %2003 = vadd.xlane.f32.xlu0 %v1882
      %v2004 = vpop.xlane.xlu0 %2003
      %2005 = vadd.xlane.f32.xlu0 %v1883
      %v2006 = vpop.xlane.xlu0 %2005
      %2007 = vadd.xlane.f32.xlu0 %v1884
      %v2008 = vpop.xlane.xlu0 %2007
      %2009 = vadd.xlane.f32.xlu0 %v1885
      %v2010 = vpop.xlane.xlu0 %2009
      %2011 = vadd.xlane.f32.xlu0 %v1886
      %v2012 = vpop.xlane.xlu0 %2011
      %2013 = vadd.xlane.f32.xlu0 %v1887
      %v2014 = vpop.xlane.xlu0 %2013
      %2015 = vadd.xlane.f32.xlu0 %v1888
      %v2016 = vpop.xlane.xlu0 %2015
      %v2017 = vtanh.pop %v1890
      %v2018 = vtanh.pop %v1892
      %v2019 = vtanh.pop %v1894
      %v2020 = vtanh.pop %v1896
      %v2021 = vtanh.pop %v1898
      %v2022 = vtanh.pop %v1900
      %v2023 = vtanh.pop %v1902
      %v2024 = vtanh.pop %v1904
      %v2025 = vtanh.pop %v1906
      %v2026 = vtanh.pop %v1908
      %v2027 = vtanh.pop %v1910
      %v2028 = vtanh.pop %v1912
      %v2029 = vtanh.pop %v1914
      %v2030 = vtanh.pop %v1916
      %v2031 = vtanh.pop %v1918
      %v2032 = vtanh.pop %v1920
      %v2033 = vtanh.pop %v1922
      %v2034 = vtanh.pop %v1924
      %v2035 = vtanh.pop %v1926
      %v2036 = vtanh.pop %v1928
      %v2037 = vtanh.pop %v1930
      %v2038 = vtanh.pop %v1932
      %v2039 = vtanh.pop %v1934
      %v2040 = vtanh.pop %v1936
      %v2041 = vtanh.pop %v1938
      %v2042 = vtanh.pop %v1940
      %v2043 = vtanh.pop %v1942
      %v2044 = vtanh.pop %v1944
      %v2045 = vtanh.pop %v1946
      %v2046 = vtanh.pop %v1948
      %v2047 = vtanh.pop %v1950
      %v2048 = vtanh.pop %v1952
      %v2049 = vtanh.pop %v1954
      %v2050 = vtanh.pop %v1956
      %v2051 = vtanh.pop %v1958
      %v2052 = vtanh.pop %v1960
      %v2053 = vtanh.pop %v1962
      %v2054 = vtanh.pop %v1964
      %v2055 = vtanh.pop %v1966
      %v2056 = vtanh.pop %v1968
      %v2057 = vtanh.pop %v1970
      %v2058 = vtanh.pop %v1972
      %v2059 = vtanh.pop %v1974
      %v2060 = vtanh.pop %v1976
      %v2061 = vtanh.pop %v1978
      %v2062 = vtanh.pop %v1980
      %v2063 = vtanh.pop %v1982
      %v2064 = vtanh.pop %v1984
      %v2065 = vtanh.pop %v1986
      %v2066 = vtanh.pop %v1988
      %v2067 = vtanh.pop %v1990
      %v2068 = vtanh.pop %v1992
      %v2069 = vtanh.pop %v1994
      %v2070 = vtanh.pop %v1996
      %v2071 = vtanh.pop %v1998
      %v2072 = vtanh.pop %v2000
      %v2073 = vtanh.pop %v2002
      %v2074 = vtanh.pop %v2004
      %v2075 = vtanh.pop %v2006
      %v2076 = vtanh.pop %v2008
      %v2077 = vtanh.pop %v2010
      %v2078 = vtanh.pop %v2012
      %v2079 = vtanh.pop %v2014
      %v2080 = vtanh.pop %v2016
      %vm2081 = vcmask 7168
      %2082 = vst.msk [vmem:[%s284] sm:$0xff] %vm2081, %v2017
      %2083 = vst.msk [vmem:[%s284 + $0x8] sm:$0xff] %vm2081, %v2018
      %2084 = vst.msk [vmem:[%s284 + $0x10] sm:$0xff] %vm2081, %v2019
      %2085 = vst.msk [vmem:[%s284 + $0x18] sm:$0xff] %vm2081, %v2020
      %2086 = vst.msk [vmem:[%s284 + $0x20] sm:$0xff] %vm2081, %v2021
      %2087 = vst.msk [vmem:[%s284 + $0x28] sm:$0xff] %vm2081, %v2022
      %2088 = vst.msk [vmem:[%s284 + $0x30] sm:$0xff] %vm2081, %v2023
      %2089 = vst.msk [vmem:[%s284 + $0x38] sm:$0xff] %vm2081, %v2024
      %2090 = vst.msk [vmem:[%s284 + $0x40] sm:$0xff] %vm2081, %v2025
      %2091 = vst.msk [vmem:[%s284 + $0x48] sm:$0xff] %vm2081, %v2026
      %2092 = vst.msk [vmem:[%s284 + $0x50] sm:$0xff] %vm2081, %v2027
      %2093 = vst.msk [vmem:[%s284 + $0x58] sm:$0xff] %vm2081, %v2028
      %2094 = vst.msk [vmem:[%s284 + $0x60] sm:$0xff] %vm2081, %v2029
      %2095 = vst.msk [vmem:[%s284 + $0x68] sm:$0xff] %vm2081, %v2030
      %2096 = vst.msk [vmem:[%s284 + $0x70] sm:$0xff] %vm2081, %v2031
      %2097 = vst.msk [vmem:[%s284 + $0x78] sm:$0xff] %vm2081, %v2032
      %2098 = vst.msk [vmem:[%s284 + $0x80] sm:$0xff] %vm2081, %v2033
      %2099 = vst.msk [vmem:[%s284 + $0x88] sm:$0xff] %vm2081, %v2034
      %2100 = vst.msk [vmem:[%s284 + $0x90] sm:$0xff] %vm2081, %v2035
      %2101 = vst.msk [vmem:[%s284 + $0x98] sm:$0xff] %vm2081, %v2036
      %2102 = vst.msk [vmem:[%s284 + $0xa0] sm:$0xff] %vm2081, %v2037
      %2103 = vst.msk [vmem:[%s284 + $0xa8] sm:$0xff] %vm2081, %v2038
      %2104 = vst.msk [vmem:[%s284 + $0xb0] sm:$0xff] %vm2081, %v2039
      %2105 = vst.msk [vmem:[%s284 + $0xb8] sm:$0xff] %vm2081, %v2040
      %2106 = vst.msk [vmem:[%s284 + $0xc0] sm:$0xff] %vm2081, %v2041
      %2107 = vst.msk [vmem:[%s284 + $0xc8] sm:$0xff] %vm2081, %v2042
      %2108 = vst.msk [vmem:[%s284 + $0xd0] sm:$0xff] %vm2081, %v2043
      %2109 = vst.msk [vmem:[%s284 + $0xd8] sm:$0xff] %vm2081, %v2044
      %2110 = vst.msk [vmem:[%s284 + $0xe0] sm:$0xff] %vm2081, %v2045
      %2111 = vst.msk [vmem:[%s284 + $0xe8] sm:$0xff] %vm2081, %v2046
      %2112 = vst.msk [vmem:[%s284 + $0xf0] sm:$0xff] %vm2081, %v2047
      %2113 = vst.msk [vmem:[%s284 + $0xf8] sm:$0xff] %vm2081, %v2048
      %2114 = vst.msk [vmem:[%s284 + $0x100] sm:$0xff] %vm2081, %v2049
      %2115 = vst.msk [vmem:[%s284 + $0x108] sm:$0xff] %vm2081, %v2050
      %2116 = vst.msk [vmem:[%s284 + $0x110] sm:$0xff] %vm2081, %v2051
      %2117 = vst.msk [vmem:[%s284 + $0x118] sm:$0xff] %vm2081, %v2052
      %2118 = vst.msk [vmem:[%s284 + $0x120] sm:$0xff] %vm2081, %v2053
      %2119 = vst.msk [vmem:[%s284 + $0x128] sm:$0xff] %vm2081, %v2054
      %2120 = vst.msk [vmem:[%s284 + $0x130] sm:$0xff] %vm2081, %v2055
      %2121 = vst.msk [vmem:[%s284 + $0x138] sm:$0xff] %vm2081, %v2056
      %2122 = vst.msk [vmem:[%s284 + $0x140] sm:$0xff] %vm2081, %v2057
      %2123 = vst.msk [vmem:[%s284 + $0x148] sm:$0xff] %vm2081, %v2058
      %2124 = vst.msk [vmem:[%s284 + $0x150] sm:$0xff] %vm2081, %v2059
      %2125 = vst.msk [vmem:[%s284 + $0x158] sm:$0xff] %vm2081, %v2060
      %2126 = vst.msk [vmem:[%s284 + $0x160] sm:$0xff] %vm2081, %v2061
      %2127 = vst.msk [vmem:[%s284 + $0x168] sm:$0xff] %vm2081, %v2062
      %2128 = vst.msk [vmem:[%s284 + $0x170] sm:$0xff] %vm2081, %v2063
      %2129 = vst.msk [vmem:[%s284 + $0x178] sm:$0xff] %vm2081, %v2064
      %2130 = vst.msk [vmem:[%s284 + $0x180] sm:$0xff] %vm2081, %v2065
      %2131 = vst.msk [vmem:[%s284 + $0x188] sm:$0xff] %vm2081, %v2066
      %2132 = vst.msk [vmem:[%s284 + $0x190] sm:$0xff] %vm2081, %v2067
      %2133 = vst.msk [vmem:[%s284 + $0x198] sm:$0xff] %vm2081, %v2068
      %2134 = vst.msk [vmem:[%s284 + $0x1a0] sm:$0xff] %vm2081, %v2069
      %2135 = vst.msk [vmem:[%s284 + $0x1a8] sm:$0xff] %vm2081, %v2070
      %2136 = vst.msk [vmem:[%s284 + $0x1b0] sm:$0xff] %vm2081, %v2071
      %2137 = vst.msk [vmem:[%s284 + $0x1b8] sm:$0xff] %vm2081, %v2072
      %2138 = vst.msk [vmem:[%s284 + $0x1c0] sm:$0xff] %vm2081, %v2073
      %2139 = vst.msk [vmem:[%s284 + $0x1c8] sm:$0xff] %vm2081, %v2074
      %2140 = vst.msk [vmem:[%s284 + $0x1d0] sm:$0xff] %vm2081, %v2075
      %2141 = vst.msk [vmem:[%s284 + $0x1d8] sm:$0xff] %vm2081, %v2076
      %2142 = vst.msk [vmem:[%s284 + $0x1e0] sm:$0xff] %vm2081, %v2077
      %2143 = vst.msk [vmem:[%s284 + $0x1e8] sm:$0xff] %vm2081, %v2078
      %2144 = vst.msk [vmem:[%s284 + $0x1f0] sm:$0xff] %vm2081, %v2079
      %2145 = vst.msk [vmem:[%s284 + $0x1f8] sm:$0xff] %vm2081, %v2080
      %s2146 = smul.u32 64, %s35
      %p2147 = scmp.lt.s32.totalorder %s2146, 127
      %s2148 = scalar_select %p2147, %s2146, 127
      %s2149 = smul.addr %s2148, 4
      %s2150 = scalar_lea.vmem %s8, %s2149
      %s2151 = smul.u32 64, %s35
      %p2152 = scmp.lt.s32.totalorder %s2151, 127
      %s2153 = scalar_select %p2152, %s2151, 127
      %s2154 = smul.addr %s2153, 8
      %s2155 = scalar_lea.vmem %s9, %s2154
      // Predicated region
      $region48: #{net_forward.4} parent=39 // pred_check
        %p2156 = pneg %p163
      $region49: #{net_forward.4} parent=39 // pred_check_branch
        %2158 = sbr.rel (%p2156) target = $region51
      $region50: #{net_forward.4} parent=39 // pred_region
        %s2159 = smul.u32 64, %s35
      $region51: #{net_forward.4} parent=39 // pred_fallthru
        _
      // Predicated region
      $region52: #{net_forward.4} parent=39 // pred_check
        %p2160 = pneg %p189
      $region53: #{net_forward.4} parent=39 // pred_check_branch
        %2162 = sbr.rel (%p2160) target = $region55
      $region54: #{net_forward.4} parent=39 // pred_region
        %s2163 = smul.u32 64, %s35
      $region55: #{net_forward.4} parent=39 // pred_fallthru
        _
    $region40: #{net_forward.4} parent=5 // pred_fallthru
      _
    %p2164 = scmp.le.s32.totalorder 2, %s30
    // Predicated region
    $region56: #{net_forward.4} parent=5 // pred_check
      %p2165 = pneg %p2164
    $region57: #{net_forward.4} parent=5 // pred_check_branch
      %2167 = sbr.rel (%p2165) target = $region59
    $region58: #{net_forward.4} parent=5 // pred_region
      %s2168 = ssub.s32 %s30, 2
      // Predicated region
      $region60: #{net_forward.4} parent=58 // pred_check
        %p2169 = pneg %p169
      $region61: #{net_forward.4} parent=58 // pred_check_branch
        %2171 = sbr.rel (%p2169) target = $region63
      $region62: #{net_forward.4} parent=58 // pred_region
        %s2172 = smul.u32 64, %s36
        %p2173 = scmp.lt.s32.totalorder %s2172, 127
        %s2174 = scalar_select %p2173, %s2172, 127
        %s2175 = smul.addr %s2174, 4
        %s2176 = scalar_lea.vmem %s8, %s2175
      $region63: #{net_forward.4} parent=58 // pred_fallthru
        _
      // Predicated region
      $region64: #{net_forward.4} parent=58 // pred_check
        %p2177 = pneg %p195
      $region65: #{net_forward.4} parent=58 // pred_check_branch
        %2179 = sbr.rel (%p2177) target = $region67
      $region66: #{net_forward.4} parent=58 // pred_region
        %s2180 = smul.u32 64, %s36
        %p2181 = scmp.lt.s32.totalorder %s2180, 127
        %s2182 = scalar_select %p2181, %s2180, 127
        %s2183 = smul.addr %s2182, 8
        %s2184 = scalar_lea.vmem %s9, %s2183
      $region67: #{net_forward.4} parent=58 // pred_fallthru
        _
    $region59: #{net_forward.4} parent=5 // pred_fallthru
      _
  $region6: #{net_forward.4} parent=0 // loop_footer
    %s34 = sadd.s32 1, %s30
  $region7: #{net_forward.4} parent=0 // loop_footer_branch
    %29 = sbr.rel target = $region3
  $region8: #{net_forward.4} parent=0 // loop_exit
    _

// kernel: net_forward.7
$region0: #{net_forward.7}
  #allocation0 [shape = 'u32[]', space=smem, size = 0x4, offset = 0x4, fixed_abs, tag = 'smem constant byte address 0x4 - core index']
  #allocation1 [shape = 'u32[144,128]{1,0:T(1,128)}', space=vmem, size = 0x12000, scoped, tag = 'internal scratch']
  %s0 = inlined_call_operand.vmem [shape: f32[8,128], index: 0, kind: input, shape index: {}]
  %s1 = inlined_call_operand.vmem [shape: f32[128,128], index: 1, kind: input, shape index: {}]
  %s2 = inlined_call_operand.vmem [shape: f32[1,128], index: 2, kind: input, shape index: {}]
  %s3 = inlined_call_operand.vmem [shape: f32[128,64], index: 3, kind: input, shape index: {}]
  %s4 = inlined_call_operand.vmem [shape: f32[1,64], index: 4, kind: input, shape index: {}]
  %s5 = inlined_call_operand.vmem [shape: f32[64,128], index: 5, kind: input, shape index: {}]
  %s6 = inlined_call_operand.vmem [shape: f32[1,128], index: 6, kind: input, shape index: {}]
  %s7 = inlined_call_operand.vmem [shape: f32[8,128], index: 7, kind: output, shape index: {}]
  %s8 = sld [smem:[#allocation0]]
  $region38: #{net_forward.7} parent=0
    _
  %s10 = ssub.s32 1, %s8
  %s11 = scalar_select 0, %s10, %s8
  // Predicated region
  $region2: #{net_forward.7} parent=0 // pred_check
    _
  $region3: #{net_forward.7} parent=0 // pred_check_branch
    %13 = sbr.rel (0) target = $region5
  $region4: #{net_forward.7} parent=0 // pred_region
    _
  $region5: #{net_forward.7} parent=0 // pred_fallthru
    _
  // Predicated region
  $region6: #{net_forward.7} parent=0 // pred_check
    _
  $region7: #{net_forward.7} parent=0 // pred_check_branch
    %15 = sbr.rel (0) target = $region9
  $region8: #{net_forward.7} parent=0 // pred_region
    _
  $region9: #{net_forward.7} parent=0 // pred_fallthru
    _
  // Predicated region
  $region10: #{net_forward.7} parent=0 // pred_check
    _
  $region11: #{net_forward.7} parent=0 // pred_check_branch
    %17 = sbr.rel (0) target = $region13
  $region12: #{net_forward.7} parent=0 // pred_region
    _
  $region13: #{net_forward.7} parent=0 // pred_fallthru
    _
  // Predicated region
  $region14: #{net_forward.7} parent=0 // pred_check
    _
  $region15: #{net_forward.7} parent=0 // pred_check_branch
    %19 = sbr.rel (0) target = $region17
  $region16: #{net_forward.7} parent=0 // pred_region
    _
  $region17: #{net_forward.7} parent=0 // pred_fallthru
    _
  // Predicated region
  $region18: #{net_forward.7} parent=0 // pred_check
    _
  $region19: #{net_forward.7} parent=0 // pred_check_branch
    %21 = sbr.rel (0) target = $region21
  $region20: #{net_forward.7} parent=0 // pred_region
    _
  $region21: #{net_forward.7} parent=0 // pred_fallthru
    _
  // Predicated region
  $region22: #{net_forward.7} parent=0 // pred_check
    _
  $region23: #{net_forward.7} parent=0 // pred_check_branch
    %23 = sbr.rel (0) target = $region25
  $region24: #{net_forward.7} parent=0 // pred_region
    _
  $region25: #{net_forward.7} parent=0 // pred_fallthru
    _
  // Predicated region
  $region26: #{net_forward.7} parent=0 // pred_check
    _
  $region27: #{net_forward.7} parent=0 // pred_check_branch
    %25 = sbr.rel (0) target = $region29
  $region28: #{net_forward.7} parent=0 // pred_region
    _
  $region29: #{net_forward.7} parent=0 // pred_fallthru
    _
  %v26 = vld [vmem:[%s0] sm:$0xff]
  %v27 = vld [vmem:[%s1] sm:$0xff]
  %v28 = vld [vmem:[%s1 + $0x8] sm:$0xff]
  %v29 = vld [vmem:[%s1 + $0x10] sm:$0xff]
  %v30 = vld [vmem:[%s1 + $0x18] sm:$0xff]
  %v31 = vld [vmem:[%s1 + $0x20] sm:$0xff]
  %v32 = vld [vmem:[%s1 + $0x28] sm:$0xff]
  %v33 = vld [vmem:[%s1 + $0x30] sm:$0xff]
  %v34 = vld [vmem:[%s1 + $0x38] sm:$0xff]
  %v35 = vld [vmem:[%s1 + $0x40] sm:$0xff]
  %v36 = vld [vmem:[%s1 + $0x48] sm:$0xff]
  %v37 = vld [vmem:[%s1 + $0x50] sm:$0xff]
  %v38 = vld [vmem:[%s1 + $0x58] sm:$0xff]
  %v39 = vld [vmem:[%s1 + $0x60] sm:$0xff]
  %v40 = vld [vmem:[%s1 + $0x68] sm:$0xff]
  %v41 = vld [vmem:[%s1 + $0x70] sm:$0xff]
  %v42 = vld [vmem:[%s1 + $0x78] sm:$0xff]
  %v43 = vld [vmem:[%s2] sm:$0x1]
  %v45 = vlaneseq
  %v46 = vshrl.u32 %v45, 7
  %v47 = vsub.s32 0, %v46
  %v48 = vrot.slane %v43, %v47
  %50 = vmatprep.subr.mxu0 0.0
  %51 = vmatpush1.msra.mxu0 %v42
  %52 = vmatprep.subr.mxu0 0.0
  %53 = vmatpush1.msra.mxu0 %v41
  %54 = vmatprep.subr.mxu0 0.0
  %55 = vmatpush1.msra.mxu0 %v40
  %56 = vmatprep.subr.mxu0 0.0
  %57 = vmatpush1.msra.mxu0 %v39
  %58 = vmatprep.subr.mxu0 0.0
  %59 = vmatpush1.msra.mxu0 %v38
  %60 = vmatprep.subr.mxu0 0.0
  %61 = vmatpush1.msra.mxu0 %v37
  %62 = vmatprep.subr.mxu0 0.0
  %63 = vmatpush1.msra.mxu0 %v36
  %64 = vmatprep.subr.mxu0 0.0
  %65 = vmatpush1.msra.mxu0 %v35
  %66 = vmatprep.subr.mxu0 0.0
  %67 = vmatpush1.msra.mxu0 %v34
  %68 = vmatprep.subr.mxu0 0.0
  %69 = vmatpush1.msra.mxu0 %v33
  %70 = vmatprep.subr.mxu0 0.0
  %71 = vmatpush1.msra.mxu0 %v32
  %72 = vmatprep.subr.mxu0 0.0
  %73 = vmatpush1.msra.mxu0 %v31
  %74 = vmatprep.subr.mxu0 0.0
  %75 = vmatpush1.msra.mxu0 %v30
  %76 = vmatprep.subr.mxu0 0.0
  %77 = vmatpush1.msra.mxu0 %v29
  %78 = vmatprep.subr.mxu0 0.0
  %79 = vmatpush1.msra.mxu0 %v28
  %80 = vmatprep.subr.mxu0 0.0
  %81 = vmatpush1.msra.mxu0 %v27
  %82 = vmatprep.subr.mxu0 0.0
  %83 = vmatpush2.msra.mxu0 0.0
  %84 = vmatprep.subr.mxu0 0.0
  %85 = vmatpush2.msra.mxu0 0.0
  %86 = vmatprep.subr.mxu0 0.0
  %87 = vmatpush2.msra.mxu0 0.0
  %88 = vmatprep.subr.mxu0 0.0
  %89 = vmatpush2.msra.mxu0 0.0
  %90 = vmatprep.subr.mxu0 0.0
  %91 = vmatpush2.msra.mxu0 0.0
  %92 = vmatprep.subr.mxu0 0.0
  %93 = vmatpush2.msra.mxu0 0.0
  %94 = vmatprep.subr.mxu0 0.0
  %95 = vmatpush2.msra.mxu0 0.0
  %96 = vmatprep.subr.mxu0 0.0
  %97 = vmatpush2.msra.mxu0 0.0
  %98 = vmatprep.subr.mxu0 0.0
  %99 = vmatpush2.msra.mxu0 0.0
  %100 = vmatprep.subr.mxu0 0.0
  %101 = vmatpush2.msra.mxu0 0.0
  %102 = vmatprep.subr.mxu0 0.0
  %103 = vmatpush2.msra.mxu0 0.0
  %104 = vmatprep.subr.mxu0 0.0
  %105 = vmatpush2.msra.mxu0 0.0
  %106 = vmatprep.subr.mxu0 0.0
  %107 = vmatpush2.msra.mxu0 0.0
  %108 = vmatprep.subr.mxu0 0.0
  %109 = vmatpush2.msra.mxu0 0.0
  %110 = vmatprep.subr.mxu0 0.0
  %111 = vmatpush2.msra.mxu0 0.0
  %112 = vmatprep.subr.mxu0 0.0
  %113 = vmatpush2.msra.mxu0 0.0
  %114 = vmatprep.mubr.f32.mxu0 0.0
  %115 = vmatmul.mubr.f32.gmra.mxu0 %v26
  %v116 = vpop.f32.mrf.mxu0
  %v117 = vadd.f32 %v48, %v116
  %v118 = vpop.f32.mrf.mxu0
  %119 = vdwg.mxu0
  %v120 = vmax.f32 %v117, 0.0
  %v121 = vld [vmem:[%s3] sm:$0xff]
  %v122 = vld [vmem:[%s3 + $0x8] sm:$0xff]
  %v123 = vld [vmem:[%s3 + $0x10] sm:$0xff]
  %v124 = vld [vmem:[%s3 + $0x18] sm:$0xff]
  %v125 = vld [vmem:[%s3 + $0x20] sm:$0xff]
  %v126 = vld [vmem:[%s3 + $0x28] sm:$0xff]
  %v127 = vld [vmem:[%s3 + $0x30] sm:$0xff]
  %v128 = vld [vmem:[%s3 + $0x38] sm:$0xff]
  %v129 = vld [vmem:[%s3 + $0x40] sm:$0xff]
  %v130 = vld [vmem:[%s3 + $0x48] sm:$0xff]
  %v131 = vld [vmem:[%s3 + $0x50] sm:$0xff]
  %v132 = vld [vmem:[%s3 + $0x58] sm:$0xff]
  %v133 = vld [vmem:[%s3 + $0x60] sm:$0xff]
  %v134 = vld [vmem:[%s3 + $0x68] sm:$0xff]
  %v135 = vld [vmem:[%s3 + $0x70] sm:$0xff]
  %v136 = vld [vmem:[%s3 + $0x78] sm:$0xff]
  %v137 = vld [vmem:[%s4] sm:$0x1]
  %v139 = vlaneseq
  %v140 = vshrl.u32 %v139, 7
  %v141 = vsub.s32 0, %v140
  %v142 = vrot.slane %v137, %v141
  %144 = vmatprep.subr.mxu0 0.0
  %145 = vmatpush1.msra.mxu0 %v136
  %146 = vmatprep.subr.mxu0 0.0
  %147 = vmatpush1.msra.mxu0 %v135
  %148 = vmatprep.subr.mxu0 0.0
  %149 = vmatpush1.msra.mxu0 %v134
  %150 = vmatprep.subr.mxu0 0.0
  %151 = vmatpush1.msra.mxu0 %v133
  %152 = vmatprep.subr.mxu0 0.0
  %153 = vmatpush1.msra.mxu0 %v132
  %154 = vmatprep.subr.mxu0 0.0
  %155 = vmatpush1.msra.mxu0 %v131
  %156 = vmatprep.subr.mxu0 0.0
  %157 = vmatpush1.msra.mxu0 %v130
  %158 = vmatprep.subr.mxu0 0.0
  %159 = vmatpush1.msra.mxu0 %v129
  %160 = vmatprep.subr.mxu0 0.0
  %161 = vmatpush1.msra.mxu0 %v128
  %162 = vmatprep.subr.mxu0 0.0
  %163 = vmatpush1.msra.mxu0 %v127
  %164 = vmatprep.subr.mxu0 0.0
  %165 = vmatpush1.msra.mxu0 %v126
  %166 = vmatprep.subr.mxu0 0.0
  %167 = vmatpush1.msra.mxu0 %v125
  %168 = vmatprep.subr.mxu0 0.0
  %169 = vmatpush1.msra.mxu0 %v124
  %170 = vmatprep.subr.mxu0 0.0
  %171 = vmatpush1.msra.mxu0 %v123
  %172 = vmatprep.subr.mxu0 0.0
  %173 = vmatpush1.msra.mxu0 %v122
  %174 = vmatprep.subr.mxu0 0.0
  %175 = vmatpush1.msra.mxu0 %v121
  %176 = vmatprep.subr.mxu0 0.0
  %177 = vmatpush2.msra.mxu0 0.0
  %178 = vmatprep.subr.mxu0 0.0
  %179 = vmatpush2.msra.mxu0 0.0
  %180 = vmatprep.subr.mxu0 0.0
  %181 = vmatpush2.msra.mxu0 0.0
  %182 = vmatprep.subr.mxu0 0.0
  %183 = vmatpush2.msra.mxu0 0.0
  %184 = vmatprep.subr.mxu0 0.0
  %185 = vmatpush2.msra.mxu0 0.0
  %186 = vmatprep.subr.mxu0 0.0
  %187 = vmatpush2.msra.mxu0 0.0
  %188 = vmatprep.subr.mxu0 0.0
  %189 = vmatpush2.msra.mxu0 0.0
  %190 = vmatprep.subr.mxu0 0.0
  %191 = vmatpush2.msra.mxu0 0.0
  %192 = vmatprep.subr.mxu0 0.0
  %193 = vmatpush2.msra.mxu0 0.0
  %194 = vmatprep.subr.mxu0 0.0
  %195 = vmatpush2.msra.mxu0 0.0
  %196 = vmatprep.subr.mxu0 0.0
  %197 = vmatpush2.msra.mxu0 0.0
  %198 = vmatprep.subr.mxu0 0.0
  %199 = vmatpush2.msra.mxu0 0.0
  %200 = vmatprep.subr.mxu0 0.0
  %201 = vmatpush2.msra.mxu0 0.0
  %202 = vmatprep.subr.mxu0 0.0
  %203 = vmatpush2.msra.mxu0 0.0
  %204 = vmatprep.subr.mxu0 0.0
  %205 = vmatpush2.msra.mxu0 0.0
  %206 = vmatprep.subr.mxu0 0.0
  %207 = vmatpush2.msra.mxu0 0.0
  %208 = vmatprep.mubr.f32.mxu0 0.0
  %209 = vmatmul.mubr.f32.gmra.mxu0 %v120
  %v210 = vpop.f32.mrf.mxu0
  %v211 = vadd.f32 %v142, %v210
  %v212 = vpop.f32.mrf.mxu0
  %213 = vdwg.mxu0
  %v214 = vmax.f32 %v211, 0.0
  %v215 = vld [vmem:[%s5] sm:$0xff]
  %v216 = vld [vmem:[%s5 + $0x8] sm:$0xff]
  %v217 = vld [vmem:[%s5 + $0x10] sm:$0xff]
  %v218 = vld [vmem:[%s5 + $0x18] sm:$0xff]
  %v219 = vld [vmem:[%s5 + $0x20] sm:$0xff]
  %v220 = vld [vmem:[%s5 + $0x28] sm:$0xff]
  %v221 = vld [vmem:[%s5 + $0x30] sm:$0xff]
  %v222 = vld [vmem:[%s5 + $0x38] sm:$0xff]
  %v223 = vld [vmem:[%s6] sm:$0x1]
  %v225 = vlaneseq
  %v226 = vshrl.u32 %v225, 7
  %v227 = vsub.s32 0, %v226
  %v228 = vrot.slane %v223, %v227
  %vm230 = vcmask 523264
  %v232 = vsel %vm230, %v214, 0
  %234 = vmatprep.subr.mxu0 0.0
  %235 = vmatpush1.msra.mxu0 0.0
  %236 = vmatprep.subr.mxu0 0.0
  %237 = vmatpush1.msra.mxu0 0.0
  %238 = vmatprep.subr.mxu0 0.0
  %239 = vmatpush1.msra.mxu0 0.0
  %240 = vmatprep.subr.mxu0 0.0
  %241 = vmatpush1.msra.mxu0 0.0
  %242 = vmatprep.subr.mxu0 0.0
  %243 = vmatpush1.msra.mxu0 0.0
  %244 = vmatprep.subr.mxu0 0.0
  %245 = vmatpush1.msra.mxu0 0.0
  %246 = vmatprep.subr.mxu0 0.0
  %247 = vmatpush1.msra.mxu0 0.0
  %248 = vmatprep.subr.mxu0 0.0
  %249 = vmatpush1.msra.mxu0 0.0
  %250 = vmatprep.subr.mxu0 0.0
  %251 = vmatpush1.msra.mxu0 %v222
  %252 = vmatprep.subr.mxu0 0.0
  %253 = vmatpush1.msra.mxu0 %v221
  %254 = vmatprep.subr.mxu0 0.0
  %255 = vmatpush1.msra.mxu0 %v220
  %256 = vmatprep.subr.mxu0 0.0
  %257 = vmatpush1.msra.mxu0 %v219
  %258 = vmatprep.subr.mxu0 0.0
  %259 = vmatpush1.msra.mxu0 %v218
  %260 = vmatprep.subr.mxu0 0.0
  %261 = vmatpush1.msra.mxu0 %v217
  %262 = vmatprep.subr.mxu0 0.0
  %263 = vmatpush1.msra.mxu0 %v216
  %264 = vmatprep.subr.mxu0 0.0
  %265 = vmatpush1.msra.mxu0 %v215
  %266 = vmatprep.subr.mxu0 0.0
  %267 = vmatpush2.msra.mxu0 0.0
  %268 = vmatprep.subr.mxu0 0.0
  %269 = vmatpush2.msra.mxu0 0.0
  %270 = vmatprep.subr.mxu0 0.0
  %271 = vmatpush2.msra.mxu0 0.0
  %272 = vmatprep.subr.mxu0 0.0
  %273 = vmatpush2.msra.mxu0 0.0
  %274 = vmatprep.subr.mxu0 0.0
  %275 = vmatpush2.msra.mxu0 0.0
  %276 = vmatprep.subr.mxu0 0.0
  %277 = vmatpush2.msra.mxu0 0.0
  %278 = vmatprep.subr.mxu0 0.0
  %279 = vmatpush2.msra.mxu0 0.0
  %280 = vmatprep.subr.mxu0 0.0
  %281 = vmatpush2.msra.mxu0 0.0
  %282 = vmatprep.subr.mxu0 0.0
  %283 = vmatpush2.msra.mxu0 0.0
  %284 = vmatprep.subr.mxu0 0.0
  %285 = vmatpush2.msra.mxu0 0.0
  %286 = vmatprep.subr.mxu0 0.0
  %287 = vmatpush2.msra.mxu0 0.0
  %288 = vmatprep.subr.mxu0 0.0
  %289 = vmatpush2.msra.mxu0 0.0
  %290 = vmatprep.subr.mxu0 0.0
  %291 = vmatpush2.msra.mxu0 0.0
  %292 = vmatprep.subr.mxu0 0.0
  %293 = vmatpush2.msra.mxu0 0.0
  %294 = vmatprep.subr.mxu0 0.0
  %295 = vmatpush2.msra.mxu0 0.0
  %296 = vmatprep.subr.mxu0 0.0
  %297 = vmatpush2.msra.mxu0 0.0
  %298 = vmatprep.mubr.f32.mxu0 0.0
  %299 = vmatmul.mubr.f32.gmra.mxu0 %v232
  %v300 = vpop.f32.mrf.mxu0
  %v301 = vadd.f32 %v228, %v300
  %v302 = vpop.f32.mrf.mxu0
  %303 = vdwg.mxu0
  %v304 = vxor.u32 %v301, 2147483648
  %v305 = vmul.f32 %v304, 1.442695
  %v306 = vpow.pop %v305
  %v307 = vadd.f32 %v306, 1.0
  %v308 = vrcp.pop %v307
  %v309 = vmul.f32 1.0, %v308
  %310 = vst [vmem:[%s7] sm:$0xff] %v309
  // Predicated region
  $region30: #{net_forward.7} parent=0 // pred_check
    _
  $region31: #{net_forward.7} parent=0 // pred_check_branch
    %312 = sbr.rel (0) target = $region33
  $region32: #{net_forward.7} parent=0 // pred_region
    _
  $region33: #{net_forward.7} parent=0 // pred_fallthru
    _
  // Predicated region
  $region34: #{net_forward.7} parent=0 // pred_check
    _
  $region35: #{net_forward.7} parent=0 // pred_check_branch
    %314 = sbr.rel (0) target = $region37
  $region36: #{net_forward.7} parent=0 // pred_region
    _
  $region37: #{net_forward.7} parent=0 // pred_fallthru
    _

</llo_original>
